<compile_context>
chip_gen: v7x
topology: tpu7x:2x2x1
jax: 0.10.0
libtpu: 0.0.40
codegen_flags: <defaults>
</compile_context>

<pallas_src>
import jax
import jax.numpy as jnp
from jax.experimental import pallas as pl
from jax.experimental.pallas import tpu as pltpu

NEG_SLOPE = 0.1


def _leaky(x):
    return jnp.where(x >= 0, x, NEG_SLOPE * x)


def _round_up(x, m):
    return ((x + m - 1) // m) * m


# ----------------------------- Pallas kernel ------------------------------- #

def _pick_tm(M, K_total, C):
    """Largest 8-aligned row tile that keeps double-buffered VMEM modest."""
    budget = 24 * 1024 * 1024            # headroom under a 32 MiB scope (v7x-safe)
    tm = 4096
    while tm > 256 and 2 * 4 * tm * (K_total + C) > budget:   # f32, double-buffered
        tm //= 2
    if M <= tm:
        tm = max(8, _round_up(M, 8))
    return tm


def fused_matmul_bias_leaky(ps, ws, b):
    """One fused Pallas call computing  leaky_relu( sum_j ps[j] @ ws[j] + b ).

    ps[j]: (M, K_j)   ws[j]: (K_j, C)   b: (1, C)   ->   (M, C)
    """
    assert len(ps) == len(ws) and len(ps) >= 1
    M = ps[0].shape[0]
    C = ws[0].shape[1]
    Ks = []
    for p, w in zip(ps, ws):
        assert p.shape[0] == M and p.shape[1] == w.shape[0] and w.shape[1] == C
        Ks.append(p.shape[1])
    assert b.shape == (1, C)

    K_total = sum(Ks)
    tm = _pick_tm(M, K_total, C)
    grid = (pl.cdiv(M, tm),)
    n = len(ps)

    def kernel(*refs):
        p_refs = refs[:n]
        w_refs = refs[n:2 * n]
        b_ref = refs[2 * n]
        o_ref = refs[2 * n + 1]
        acc = jnp.dot(p_refs[0][...], w_refs[0][...],
                      preferred_element_type=jnp.float32)
        for pr, wr in zip(p_refs[1:], w_refs[1:]):
            acc = acc + jnp.dot(pr[...], wr[...],
                                preferred_element_type=jnp.float32)
        o_ref[...] = _leaky(acc + b_ref[...]).astype(o_ref.dtype)

    in_specs = []
    args = []
    for p in ps:
        # patches: tiled over M, auto double-buffered by the pipeline
        in_specs.append(pl.BlockSpec((tm, p.shape[1]), lambda i: (i, 0)))
        args.append(p)
    for w in ws:
        # weights: constant block index -> fetched once, VMEM resident
        in_specs.append(pl.BlockSpec(w.shape, lambda i: (0, 0)))
        args.append(w)
    in_specs.append(pl.BlockSpec((1, C), lambda i: (0, 0)))
    args.append(b)

    cost = pl.CostEstimate(
        flops=2 * M * K_total * C,
        transcendentals=0,
        bytes_accessed=4 * (M * K_total + K_total * C + C + M * C),
    )

    return pl.pallas_call(
        kernel,
        out_shape=jax.ShapeDtypeStruct((M, C), ps[0].dtype),
        grid_spec=pltpu.PrefetchScalarGridSpec(
            num_scalar_prefetch=0,
            grid=grid,
            in_specs=in_specs,
            out_specs=pl.BlockSpec((tm, C), lambda i: (i, 0)),
        ),
        compiler_params=pltpu.CompilerParams(
            dimension_semantics=("parallel",),    # megacore sharding on v7x
            vmem_limit_bytes=32 * 1024 * 1024,
        ),
        cost_estimate=cost,
    )(*args)


# ------------------------------ JAX glue ----------------------------------- #

def _im2col3(x_nhwc, stride):
    """3x3 patches with padding=1 and given stride -> (N*Ho*Wo, 9*C), Ho, Wo."""
    N, H, W, C = x_nhwc.shape
    xp = jnp.pad(x_nhwc, ((0, 0), (1, 1), (1, 1), (0, 0)))
    Ho = (H + 2 - 3) // stride + 1
    Wo = (W + 2 - 3) // stride + 1
    cols = []
    for dy in range(3):
        for dx in range(3):
            cols.append(xp[:, dy:dy + stride * Ho:stride,
                            dx:dx + stride * Wo:stride, :])
    patches = jnp.concatenate(cols, axis=-1)           # (N, Ho, Wo, 9*C)
    return patches.reshape(N * Ho * Wo, 9 * C), Ho, Wo


def _w3x3_to_mat(w_oihw):
    # (Cout, Cin, 3, 3) -> (9*Cin, Cout), matching im2col ordering (dy, dx, cin)
    Cout, Cin, _, _ = w_oihw.shape
    return jnp.transpose(w_oihw, (2, 3, 1, 0)).reshape(9 * Cin, Cout)


def residual_block_forward(x_nhwc, params):
    """One ResidualBlock (down_sample=True, norm=None), NHWC in / NHWC out."""
    w0, b0, w1, b1, wd, bd = params
    N, H, W, Cin = x_nhwc.shape
    Cout = w0.shape[0]

    # conv0: 3x3, stride 2, pad 1, LeakyReLU(0.1)
    p0, Ho, Wo = _im2col3(x_nhwc, stride=2)
    y0 = fused_matmul_bias_leaky([p0], [_w3x3_to_mat(w0)], b0.reshape(1, Cout))
    y0 = y0.reshape(N, Ho, Wo, Cout)

    # conv1 (3x3 s1, no act) + down0 (1x1 s2, no act) + residual add + LeakyReLU
    # fused into ONE kernel:  leaky( p1 @ W1  +  x_strided @ Wd  +  (b1 + bd) )
    p1, _, _ = _im2col3(y0, stride=1)
    xs = x_nhwc[:, ::2, ::2, :].reshape(N * Ho * Wo, Cin)
    out = fused_matmul_bias_leaky(
        [p1, xs],
        [_w3x3_to_mat(w1), wd.reshape(Cout, Cin).T],
        (b1 + bd).reshape(1, Cout),
    )
    return out.reshape(N, Ho, Wo, Cout)


def feature_pyramid_forward(x_nchw, all_params):
    """FeaturePyramid2D.forward: returns a list of NCHW feature maps."""
    x = jnp.transpose(x_nchw, (0, 2, 3, 1))          # NCHW -> NHWC
    outputs = []
    for params in all_params:
        x = residual_block_forward(x, params)
        outputs.append(jnp.transpose(x, (0, 3, 1, 2)))   # back to NCHW
    return outputs


# --------------------------- parameter creation ----------------------------- #

def make_params(n_channels, key):
    all_params = []
    for cin, cout in zip(n_channels[:-1], n_channels[1:]):
        key, k0, k1, k2, k3, k4, k5 = jax.random.split(key, 7)
        w0 = 0.1 * jax.random.normal(k0, (cout, cin, 3, 3), jnp.float32)
        b0 = 0.1 * jax.random.normal(k1, (cout,), jnp.float32)
        w1 = 0.1 * jax.random.normal(k2, (cout, cout, 3, 3), jnp.float32)
        b1 = 0.1 * jax.random.normal(k3, (cout,), jnp.float32)
        wd = 0.1 * jax.random.normal(k4, (cout, cin, 1, 1), jnp.float32)
        bd = 0.1 * jax.random.normal(k5, (cout,), jnp.float32)
        all_params.append((w0, b0, w1, b1, wd, bd))
    return all_params


# ------------------------- pure-JAX reference (NCHW) ------------------------ #

def _ref_conv(x, w, b, stride, padding):
    y = jax.lax.conv_general_dilated(
        x, w, (stride, stride), [(padding, padding)] * 2,
        dimension_numbers=('NCHW', 'OIHW', 'NCHW'))
    return y + b[None, :, None, None]


def _ref_block(x, params):
    w0, b0, w1, b1, wd, bd = params
    out = _leaky(_ref_conv(x, w0, b0, 2, 1))   # conv0 + LeakyReLU(0.1)
    out = _ref_conv(out, w1, b1, 1, 1)         # conv1, no act
    down = _ref_conv(x, wd, bd, 2, 0)          # down0 (1x1 s2), no act
    return _leaky(out + down)


def _ref_pyramid(x, all_params):
    outs = []
    for p in all_params:
        x = _ref_block(x, p)
        outs.append(x)
    return outs


# ----------------------------------- main ----------------------------------- #

if __name__ == "__main__":
    n_channels = [4, 8, 16]          # two pyramid levels
    key = jax.random.PRNGKey(0)
    kx, kp = jax.random.split(key)
    x = jax.random.normal(kx, (2, 4, 16, 16), jnp.float32)  # NCHW, like PyTorch
    params = make_params(n_channels, kp)

    fwd = jax.jit(feature_pyramid_forward)
    outs = fwd(x, params)
    outs = [jax.block_until_ready(o) for o in outs]

    refs = _ref_pyramid(x, params)
    for o, r in zip(outs, refs):
        assert o.shape == r.shape, (o.shape, r.shape)
        err = float(jnp.max(jnp.abs(o - r)))
        assert err < 1e-4, err

    print("KERNEL_OK")
</pallas_src>

<mosaic_0001>
module attributes {stable_mosaic.version = 11 : i64} {
  func.func @kernel(%arg0: i32, %arg1: memref<128x36xf32, #tpu.memory_space<vmem>>, %arg2: memref<36x8xf32, #tpu.memory_space<vmem>>, %arg3: memref<1x8xf32, #tpu.memory_space<vmem>>, %arg4: memref<128x8xf32, #tpu.memory_space<vmem>>) attributes {dimension_semantics = [#tpu.dimension_semantics<parallel>], iteration_bounds = array<i64: 1>, scalar_prefetch = 0 : i64, scratch_operands = 0 : i64, tpu.core_type = #tpu.core_type<tc>, window_params = [{transform_indices = @transform_0, window_bounds = array<i64: 128, 36>}, {pipeline_mode = #tpu.pipeline_mode<synchronous>, transform_indices = @transform_1, window_bounds = array<i64: 36, 8>}, {pipeline_mode = #tpu.pipeline_mode<synchronous>, transform_indices = @transform_2, window_bounds = array<i64: 1, 8>}, {transform_indices = @transform_3, window_bounds = array<i64: 128, 8>}]} {
    %c0 = arith.constant 0 : index
    %c0_0 = arith.constant 0 : index
    %0 = vector.load %arg1[%c0, %c0_0] : memref<128x36xf32, #tpu.memory_space<vmem>>, vector<128x36xf32>
    %c0_1 = arith.constant 0 : index
    %c0_2 = arith.constant 0 : index
    %1 = vector.load %arg2[%c0_1, %c0_2] : memref<36x8xf32, #tpu.memory_space<vmem>>, vector<36x8xf32>
    %cst = arith.constant dense<0.000000e+00> : vector<128x8xf32>
    %2 = tpu.matmul %0, %1, %cst {dimension_numbers = #tpu.dot_dimension_numbers<[1], [0], [0], [1], [0, 0, 1, 1], [], []>} : vector<128x36xf32>, vector<36x8xf32>, vector<128x8xf32> -> vector<128x8xf32>
    %c0_3 = arith.constant 0 : index
    %c0_4 = arith.constant 0 : index
    %3 = vector.load %arg3[%c0_3, %c0_4] : memref<1x8xf32, #tpu.memory_space<vmem>>, vector<1x8xf32>
    %4 = vector.broadcast %3 : vector<1x8xf32> to vector<128x8xf32>
    %5 = arith.addf %2, %4 : vector<128x8xf32>
    %cst_5 = arith.constant 0.000000e+00 : f32
    %6 = vector.broadcast %cst_5 : f32 to vector<128x8xf32>
    %7 = arith.cmpf oge, %5, %6 : vector<128x8xf32>
    %cst_6 = arith.constant 1.000000e-01 : f32
    %8 = vector.broadcast %cst_6 : f32 to vector<128x8xf32>
    %9 = arith.mulf %8, %5 : vector<128x8xf32>
    %10 = arith.select %7, %5, %9 : vector<128x8xi1>, vector<128x8xf32>
    %c0_7 = arith.constant 0 : index
    %c0_8 = arith.constant 0 : index
    %11 = vector.load %arg4[%c0_7, %c0_8] : memref<128x8xf32, #tpu.memory_space<vmem>>, vector<128x8xf32>
    tpu.vector_store %arg4[%c0_7, %c0_8], %10 {strides = array<i32>} : memref<128x8xf32, #tpu.memory_space<vmem>>, vector<128x8xf32>,
    return
  }
  func.func @transform_0(%arg0: i32) -> (i32, i32) {
    %c0_i32 = arith.constant 0 : i32
    %c0_i32_0 = arith.constant 0 : i32
    return %arg0, %c0_i32 : i32, i32
  }
  func.func @transform_1(%arg0: i32) -> (i32, i32) {
    %c0_i32 = arith.constant 0 : i32
    %c0_i32_0 = arith.constant 0 : i32
    %c0_i32_1 = arith.constant 0 : i32
    return %c0_i32, %c0_i32_0 : i32, i32
  }
  func.func @transform_2(%arg0: i32) -> (i32, i32) {
    %c0_i32 = arith.constant 0 : i32
    %c0_i32_0 = arith.constant 0 : i32
    %c0_i32_1 = arith.constant 0 : i32
    return %c0_i32, %c0_i32_0 : i32, i32
  }
  func.func @transform_3(%arg0: i32) -> (i32, i32) {
    %c0_i32 = arith.constant 0 : i32
    %c0_i32_0 = arith.constant 0 : i32
    return %arg0, %c0_i32 : i32, i32
  }
}

module attributes {stable_mosaic.version = 11 : i64} {
  func.func @kernel(%arg0: i32, %arg1: memref<128x72xf32, #tpu.memory_space<vmem>>, %arg2: memref<128x4xf32, #tpu.memory_space<vmem>>, %arg3: memref<72x8xf32, #tpu.memory_space<vmem>>, %arg4: memref<4x8xf32, #tpu.memory_space<vmem>>, %arg5: memref<1x8xf32, #tpu.memory_space<vmem>>, %arg6: memref<128x8xf32, #tpu.memory_space<vmem>>) attributes {dimension_semantics = [#tpu.dimension_semantics<parallel>], iteration_bounds = array<i64: 1>, scalar_prefetch = 0 : i64, scratch_operands = 0 : i64, tpu.core_type = #tpu.core_type<tc>, window_params = [{transform_indices = @transform_0, window_bounds = array<i64: 128, 72>}, {transform_indices = @transform_1, window_bounds = array<i64: 128, 4>}, {pipeline_mode = #tpu.pipeline_mode<synchronous>, transform_indices = @transform_2, window_bounds = array<i64: 72, 8>}, {pipeline_mode = #tpu.pipeline_mode<synchronous>, transform_indices = @transform_3, window_bounds = array<i64: 4, 8>}, {pipeline_mode = #tpu.pipeline_mode<synchronous>, transform_indices = @transform_4, window_bounds = array<i64: 1, 8>}, {transform_indices = @transform_5, window_bounds = array<i64: 128, 8>}]} {
    %c0 = arith.constant 0 : index
    %c0_0 = arith.constant 0 : index
    %0 = vector.load %arg1[%c0, %c0_0] : memref<128x72xf32, #tpu.memory_space<vmem>>, vector<128x72xf32>
    %c0_1 = arith.constant 0 : index
    %c0_2 = arith.constant 0 : index
    %1 = vector.load %arg3[%c0_1, %c0_2] : memref<72x8xf32, #tpu.memory_space<vmem>>, vector<72x8xf32>
    %cst = arith.constant dense<0.000000e+00> : vector<128x8xf32>
    %2 = tpu.matmul %0, %1, %cst {dimension_numbers = #tpu.dot_dimension_numbers<[1], [0], [0], [1], [0, 0, 1, 1], [], []>} : vector<128x72xf32>, vector<72x8xf32>, vector<128x8xf32> -> vector<128x8xf32>
    %c0_3 = arith.constant 0 : index
    %c0_4 = arith.constant 0 : index
    %3 = vector.load %arg2[%c0_3, %c0_4] : memref<128x4xf32, #tpu.memory_space<vmem>>, vector<128x4xf32>
    %c0_5 = arith.constant 0 : index
    %c0_6 = arith.constant 0 : index
    %4 = vector.load %arg4[%c0_5, %c0_6] : memref<4x8xf32, #tpu.memory_space<vmem>>, vector<4x8xf32>
    %cst_7 = arith.constant dense<0.000000e+00> : vector<128x8xf32>
    %5 = tpu.matmul %3, %4, %cst_7 {dimension_numbers = #tpu.dot_dimension_numbers<[1], [0], [0], [1], [0, 0, 1, 1], [], []>} : vector<128x4xf32>, vector<4x8xf32>, vector<128x8xf32> -> vector<128x8xf32>
    %6 = arith.addf %2, %5 : vector<128x8xf32>
    %c0_8 = arith.constant 0 : index
    %c0_9 = arith.constant 0 : index
    %7 = vector.load %arg5[%c0_8, %c0_9] : memref<1x8xf32, #tpu.memory_space<vmem>>, vector<1x8xf32>
    %8 = vector.broadcast %7 : vector<1x8xf32> to vector<128x8xf32>
    %9 = arith.addf %6, %8 : vector<128x8xf32>
    %cst_10 = arith.constant 0.000000e+00 : f32
    %10 = vector.broadcast %cst_10 : f32 to vector<128x8xf32>
    %11 = arith.cmpf oge, %9, %10 : vector<128x8xf32>
    %cst_11 = arith.constant 1.000000e-01 : f32
    %12 = vector.broadcast %cst_11 : f32 to vector<128x8xf32>
    %13 = arith.mulf %12, %9 : vector<128x8xf32>
    %14 = arith.select %11, %9, %13 : vector<128x8xi1>, vector<128x8xf32>
    %c0_12 = arith.constant 0 : index
    %c0_13 = arith.constant 0 : index
    %15 = vector.load %arg6[%c0_12, %c0_13] : memref<128x8xf32, #tpu.memory_space<vmem>>, vector<128x8xf32>
    tpu.vector_store %arg6[%c0_12, %c0_13], %14 {strides = array<i32>} : memref<128x8xf32, #tpu.memory_space<vmem>>, vector<128x8xf32>,
    return
  }
  func.func @transform_0(%arg0: i32) -> (i32, i32) {
    %c0_i32 = arith.constant 0 : i32
    %c0_i32_0 = arith.constant 0 : i32
    return %arg0, %c0_i32 : i32, i32
  }
  func.func @transform_1(%arg0: i32) -> (i32, i32) {
    %c0_i32 = arith.constant 0 : i32
    %c0_i32_0 = arith.constant 0 : i32
    return %arg0, %c0_i32 : i32, i32
  }
  func.func @transform_2(%arg0: i32) -> (i32, i32) {
    %c0_i32 = arith.constant 0 : i32
    %c0_i32_0 = arith.constant 0 : i32
    %c0_i32_1 = arith.constant 0 : i32
    return %c0_i32, %c0_i32_0 : i32, i32
  }
  func.func @transform_3(%arg0: i32) -> (i32, i32) {
    %c0_i32 = arith.constant 0 : i32
    %c0_i32_0 = arith.constant 0 : i32
    %c0_i32_1 = arith.constant 0 : i32
    return %c0_i32, %c0_i32_0 : i32, i32
  }
  func.func @transform_4(%arg0: i32) -> (i32, i32) {
    %c0_i32 = arith.constant 0 : i32
    %c0_i32_0 = arith.constant 0 : i32
    %c0_i32_1 = arith.constant 0 : i32
    return %c0_i32, %c0_i32_0 : i32, i32
  }
  func.func @transform_5(%arg0: i32) -> (i32, i32) {
    %c0_i32 = arith.constant 0 : i32
    %c0_i32_0 = arith.constant 0 : i32
    return %arg0, %c0_i32 : i32, i32
  }
}

module attributes {stable_mosaic.version = 11 : i64} {
  func.func @kernel(%arg0: i32, %arg1: memref<32x72xf32, #tpu.memory_space<vmem>>, %arg2: memref<72x16xf32, #tpu.memory_space<vmem>>, %arg3: memref<1x16xf32, #tpu.memory_space<vmem>>, %arg4: memref<32x16xf32, #tpu.memory_space<vmem>>) attributes {dimension_semantics = [#tpu.dimension_semantics<parallel>], iteration_bounds = array<i64: 1>, scalar_prefetch = 0 : i64, scratch_operands = 0 : i64, tpu.core_type = #tpu.core_type<tc>, window_params = [{transform_indices = @transform_0, window_bounds = array<i64: 32, 72>}, {pipeline_mode = #tpu.pipeline_mode<synchronous>, transform_indices = @transform_1, window_bounds = array<i64: 72, 16>}, {pipeline_mode = #tpu.pipeline_mode<synchronous>, transform_indices = @transform_2, window_bounds = array<i64: 1, 16>}, {transform_indices = @transform_3, window_bounds = array<i64: 32, 16>}]} {
    %c0 = arith.constant 0 : index
    %c0_0 = arith.constant 0 : index
    %0 = vector.load %arg1[%c0, %c0_0] : memref<32x72xf32, #tpu.memory_space<vmem>>, vector<32x72xf32>
    %c0_1 = arith.constant 0 : index
    %c0_2 = arith.constant 0 : index
    %1 = vector.load %arg2[%c0_1, %c0_2] : memref<72x16xf32, #tpu.memory_space<vmem>>, vector<72x16xf32>
    %cst = arith.constant dense<0.000000e+00> : vector<32x16xf32>
    %2 = tpu.matmul %0, %1, %cst {dimension_numbers = #tpu.dot_dimension_numbers<[1], [0], [0], [1], [0, 0, 1, 1], [], []>} : vector<32x72xf32>, vector<72x16xf32>, vector<32x16xf32> -> vector<32x16xf32>
    %c0_3 = arith.constant 0 : index
    %c0_4 = arith.constant 0 : index
    %3 = vector.load %arg3[%c0_3, %c0_4] : memref<1x16xf32, #tpu.memory_space<vmem>>, vector<1x16xf32>
    %4 = vector.broadcast %3 : vector<1x16xf32> to vector<32x16xf32>
    %5 = arith.addf %2, %4 : vector<32x16xf32>
    %cst_5 = arith.constant 0.000000e+00 : f32
    %6 = vector.broadcast %cst_5 : f32 to vector<32x16xf32>
    %7 = arith.cmpf oge, %5, %6 : vector<32x16xf32>
    %cst_6 = arith.constant 1.000000e-01 : f32
    %8 = vector.broadcast %cst_6 : f32 to vector<32x16xf32>
    %9 = arith.mulf %8, %5 : vector<32x16xf32>
    %10 = arith.select %7, %5, %9 : vector<32x16xi1>, vector<32x16xf32>
    %c0_7 = arith.constant 0 : index
    %c0_8 = arith.constant 0 : index
    %11 = vector.load %arg4[%c0_7, %c0_8] : memref<32x16xf32, #tpu.memory_space<vmem>>, vector<32x16xf32>
    tpu.vector_store %arg4[%c0_7, %c0_8], %10 {strides = array<i32>} : memref<32x16xf32, #tpu.memory_space<vmem>>, vector<32x16xf32>,
    return
  }
  func.func @transform_0(%arg0: i32) -> (i32, i32) {
    %c0_i32 = arith.constant 0 : i32
    %c0_i32_0 = arith.constant 0 : i32
    return %arg0, %c0_i32 : i32, i32
  }
  func.func @transform_1(%arg0: i32) -> (i32, i32) {
    %c0_i32 = arith.constant 0 : i32
    %c0_i32_0 = arith.constant 0 : i32
    %c0_i32_1 = arith.constant 0 : i32
    return %c0_i32, %c0_i32_0 : i32, i32
  }
  func.func @transform_2(%arg0: i32) -> (i32, i32) {
    %c0_i32 = arith.constant 0 : i32
    %c0_i32_0 = arith.constant 0 : i32
    %c0_i32_1 = arith.constant 0 : i32
    return %c0_i32, %c0_i32_0 : i32, i32
  }
  func.func @transform_3(%arg0: i32) -> (i32, i32) {
    %c0_i32 = arith.constant 0 : i32
    %c0_i32_0 = arith.constant 0 : i32
    return %arg0, %c0_i32 : i32, i32
  }
}

module attributes {stable_mosaic.version = 11 : i64} {
  func.func @kernel(%arg0: i32, %arg1: memref<32x144xf32, #tpu.memory_space<vmem>>, %arg2: memref<32x8xf32, #tpu.memory_space<vmem>>, %arg3: memref<144x16xf32, #tpu.memory_space<vmem>>, %arg4: memref<8x16xf32, #tpu.memory_space<vmem>>, %arg5: memref<1x16xf32, #tpu.memory_space<vmem>>, %arg6: memref<32x16xf32, #tpu.memory_space<vmem>>) attributes {dimension_semantics = [#tpu.dimension_semantics<parallel>], iteration_bounds = array<i64: 1>, scalar_prefetch = 0 : i64, scratch_operands = 0 : i64, tpu.core_type = #tpu.core_type<tc>, window_params = [{transform_indices = @transform_0, window_bounds = array<i64: 32, 144>}, {transform_indices = @transform_1, window_bounds = array<i64: 32, 8>}, {pipeline_mode = #tpu.pipeline_mode<synchronous>, transform_indices = @transform_2, window_bounds = array<i64: 144, 16>}, {pipeline_mode = #tpu.pipeline_mode<synchronous>, transform_indices = @transform_3, window_bounds = array<i64: 8, 16>}, {pipeline_mode = #tpu.pipeline_mode<synchronous>, transform_indices = @transform_4, window_bounds = array<i64: 1, 16>}, {transform_indices = @transform_5, window_bounds = array<i64: 32, 16>}]} {
    %c0 = arith.constant 0 : index
    %c0_0 = arith.constant 0 : index
    %0 = vector.load %arg1[%c0, %c0_0] : memref<32x144xf32, #tpu.memory_space<vmem>>, vector<32x144xf32>
    %c0_1 = arith.constant 0 : index
    %c0_2 = arith.constant 0 : index
    %1 = vector.load %arg3[%c0_1, %c0_2] : memref<144x16xf32, #tpu.memory_space<vmem>>, vector<144x16xf32>
    %cst = arith.constant dense<0.000000e+00> : vector<32x16xf32>
    %2 = tpu.matmul %0, %1, %cst {dimension_numbers = #tpu.dot_dimension_numbers<[1], [0], [0], [1], [0, 0, 1, 1], [], []>} : vector<32x144xf32>, vector<144x16xf32>, vector<32x16xf32> -> vector<32x16xf32>
    %c0_3 = arith.constant 0 : index
    %c0_4 = arith.constant 0 : index
    %3 = vector.load %arg2[%c0_3, %c0_4] : memref<32x8xf32, #tpu.memory_space<vmem>>, vector<32x8xf32>
    %c0_5 = arith.constant 0 : index
    %c0_6 = arith.constant 0 : index
    %4 = vector.load %arg4[%c0_5, %c0_6] : memref<8x16xf32, #tpu.memory_space<vmem>>, vector<8x16xf32>
    %cst_7 = arith.constant dense<0.000000e+00> : vector<32x16xf32>
    %5 = tpu.matmul %3, %4, %cst_7 {dimension_numbers = #tpu.dot_dimension_numbers<[1], [0], [0], [1], [0, 0, 1, 1], [], []>} : vector<32x8xf32>, vector<8x16xf32>, vector<32x16xf32> -> vector<32x16xf32>
    %6 = arith.addf %2, %5 : vector<32x16xf32>
    %c0_8 = arith.constant 0 : index
    %c0_9 = arith.constant 0 : index
    %7 = vector.load %arg5[%c0_8, %c0_9] : memref<1x16xf32, #tpu.memory_space<vmem>>, vector<1x16xf32>
    %8 = vector.broadcast %7 : vector<1x16xf32> to vector<32x16xf32>
    %9 = arith.addf %6, %8 : vector<32x16xf32>
    %cst_10 = arith.constant 0.000000e+00 : f32
    %10 = vector.broadcast %cst_10 : f32 to vector<32x16xf32>
    %11 = arith.cmpf oge, %9, %10 : vector<32x16xf32>
    %cst_11 = arith.constant 1.000000e-01 : f32
    %12 = vector.broadcast %cst_11 : f32 to vector<32x16xf32>
    %13 = arith.mulf %12, %9 : vector<32x16xf32>
    %14 = arith.select %11, %9, %13 : vector<32x16xi1>, vector<32x16xf32>
    %c0_12 = arith.constant 0 : index
    %c0_13 = arith.constant 0 : index
    %15 = vector.load %arg6[%c0_12, %c0_13] : memref<32x16xf32, #tpu.memory_space<vmem>>, vector<32x16xf32>
    tpu.vector_store %arg6[%c0_12, %c0_13], %14 {strides = array<i32>} : memref<32x16xf32, #tpu.memory_space<vmem>>, vector<32x16xf32>,
    return
  }
  func.func @transform_0(%arg0: i32) -> (i32, i32) {
    %c0_i32 = arith.constant 0 : i32
    %c0_i32_0 = arith.constant 0 : i32
    return %arg0, %c0_i32 : i32, i32
  }
  func.func @transform_1(%arg0: i32) -> (i32, i32) {
    %c0_i32 = arith.constant 0 : i32
    %c0_i32_0 = arith.constant 0 : i32
    return %arg0, %c0_i32 : i32, i32
  }
  func.func @transform_2(%arg0: i32) -> (i32, i32) {
    %c0_i32 = arith.constant 0 : i32
    %c0_i32_0 = arith.constant 0 : i32
    %c0_i32_1 = arith.constant 0 : i32
    return %c0_i32, %c0_i32_0 : i32, i32
  }
  func.func @transform_3(%arg0: i32) -> (i32, i32) {
    %c0_i32 = arith.constant 0 : i32
    %c0_i32_0 = arith.constant 0 : i32
    %c0_i32_1 = arith.constant 0 : i32
    return %c0_i32, %c0_i32_0 : i32, i32
  }
  func.func @transform_4(%arg0: i32) -> (i32, i32) {
    %c0_i32 = arith.constant 0 : i32
    %c0_i32_0 = arith.constant 0 : i32
    %c0_i32_1 = arith.constant 0 : i32
    return %c0_i32, %c0_i32_0 : i32, i32
  }
  func.func @transform_5(%arg0: i32) -> (i32, i32) {
    %c0_i32 = arith.constant 0 : i32
    %c0_i32_0 = arith.constant 0 : i32
    return %arg0, %c0_i32 : i32, i32
  }
}

</mosaic_0001>

<llo_original>
// kernel: feature_pyramid_forward.4
$region0: #{feature_pyramid_forward.4}
  #allocation0 [shape = 'u32[]', space=smem, size = 0x4, offset = 0x4, fixed_abs, tag = 'smem constant byte address 0x4 - core index']
  #allocation1 [shape = 'u32[144,128]{1,0:T(1,128)}', space=vmem, size = 0x12000, scoped, tag = 'internal scratch']
  %s0 = inlined_call_operand.vmem [shape: f32[128,36], index: 0, kind: input, shape index: {}]
  %s1 = inlined_call_operand.vmem [shape: f32[36,8], index: 1, kind: input, shape index: {}]
  %s2 = inlined_call_operand.vmem [shape: f32[1,8], index: 2, kind: input, shape index: {}]
  %s3 = inlined_call_operand.vmem [shape: f32[128,8], index: 3, kind: output, shape index: {}]
  %s4 = sld [smem:[#allocation0]]
  $region22: #{feature_pyramid_forward.4} parent=0
    _
  %s6 = ssub.s32 1, %s4
  %s7 = scalar_select 0, %s6, %s4
  // Predicated region
  $region2: #{feature_pyramid_forward.4} parent=0 // pred_check
    _
  $region3: #{feature_pyramid_forward.4} parent=0 // pred_check_branch
    %9 = sbr.rel (0) target = $region5
  $region4: #{feature_pyramid_forward.4} parent=0 // pred_region
    _
  $region5: #{feature_pyramid_forward.4} parent=0 // pred_fallthru
    _
  // Predicated region
  $region6: #{feature_pyramid_forward.4} parent=0 // pred_check
    _
  $region7: #{feature_pyramid_forward.4} parent=0 // pred_check_branch
    %11 = sbr.rel (0) target = $region9
  $region8: #{feature_pyramid_forward.4} parent=0 // pred_region
    _
  $region9: #{feature_pyramid_forward.4} parent=0 // pred_fallthru
    _
  // Predicated region
  $region10: #{feature_pyramid_forward.4} parent=0 // pred_check
    _
  $region11: #{feature_pyramid_forward.4} parent=0 // pred_check_branch
    %13 = sbr.rel (0) target = $region13
  $region12: #{feature_pyramid_forward.4} parent=0 // pred_region
    _
  $region13: #{feature_pyramid_forward.4} parent=0 // pred_fallthru
    _
  %v14 = vld [vmem:[%s0] sm:$0xff]
  %v15 = vld [vmem:[%s0 + $0x8] sm:$0xff]
  %v16 = vld [vmem:[%s0 + $0x10] sm:$0xff]
  %v17 = vld [vmem:[%s0 + $0x18] sm:$0xff]
  %v18 = vld [vmem:[%s0 + $0x20] sm:$0xff]
  %v19 = vld [vmem:[%s0 + $0x28] sm:$0xff]
  %v20 = vld [vmem:[%s0 + $0x30] sm:$0xff]
  %v21 = vld [vmem:[%s0 + $0x38] sm:$0xff]
  %v22 = vld [vmem:[%s0 + $0x40] sm:$0xff]
  %v23 = vld [vmem:[%s0 + $0x48] sm:$0xff]
  %v24 = vld [vmem:[%s0 + $0x50] sm:$0xff]
  %v25 = vld [vmem:[%s0 + $0x58] sm:$0xff]
  %v26 = vld [vmem:[%s0 + $0x60] sm:$0xff]
  %v27 = vld [vmem:[%s0 + $0x68] sm:$0xff]
  %v28 = vld [vmem:[%s0 + $0x70] sm:$0xff]
  %v29 = vld [vmem:[%s0 + $0x78] sm:$0xff]
  %v30 = vld [vmem:[%s1] sm:$0xff]
  %v31 = vld [vmem:[%s1 + $0x8] sm:$0xff]
  %v32 = vld [vmem:[%s1 + $0x10] sm:$0xff]
  %v33 = vld [vmem:[%s1 + $0x18] sm:$0xff]
  %v34 = vld [vmem:[%s1 + $0x20] sm:$0xf]
  %v35 = vld [vmem:[%s2] sm:$0x1]
  %v37 = vlaneseq
  %v38 = vshrl.u32 %v37, 7
  %v39 = vsub.s32 0, %v38
  %v40 = vrot.slane %v35, %v39
  %vm42 = vcmask 293888
  %v44 = vsel %vm42, %v14, 0
  %v47 = vsel %vm42, %v15, 0
  %v50 = vsel %vm42, %v16, 0
  %v53 = vsel %vm42, %v17, 0
  %v56 = vsel %vm42, %v18, 0
  %v59 = vsel %vm42, %v19, 0
  %v62 = vsel %vm42, %v20, 0
  %v65 = vsel %vm42, %v21, 0
  %v68 = vsel %vm42, %v22, 0
  %v71 = vsel %vm42, %v23, 0
  %v74 = vsel %vm42, %v24, 0
  %v77 = vsel %vm42, %v25, 0
  %v80 = vsel %vm42, %v26, 0
  %v83 = vsel %vm42, %v27, 0
  %v86 = vsel %vm42, %v28, 0
  %v89 = vsel %vm42, %v29, 0
  %vm91 = vcmask 1043456
  %v93 = vsel %vm91, %v34, 0
  %95 = vmatprep.subr.mxu0 0.0
  %96 = vmatpush1.msra.mxu0 %v30
  %97 = vmatprep.subr.mxu0 0.0
  %98 = vmatpush1.msra.mxu0 %v31
  %99 = vmatprep.subr.mxu0 0.0
  %100 = vmatpush1.msra.mxu0 %v32
  %101 = vmatprep.subr.mxu0 0.0
  %102 = vmatpush1.msra.mxu0 %v33
  %103 = vmatprep.subr.mxu0 0.0
  %104 = vmatpush1.msra.mxu0 %v93
  %105 = vmatprep.subr.mxu0 0.0
  %106 = vmatpush1.msra.mxu0 0.0
  %107 = vmatprep.subr.mxu0 0.0
  %108 = vmatpush1.msra.mxu0 0.0
  %109 = vmatprep.subr.mxu0 0.0
  %110 = vmatpush1.msra.mxu0 0.0
  %111 = vmatprep.subr.mxu0 0.0
  %112 = vmatpush1.msra.mxu0 0.0
  %113 = vmatprep.subr.mxu0 0.0
  %114 = vmatpush1.msra.mxu0 0.0
  %115 = vmatprep.subr.mxu0 0.0
  %116 = vmatpush1.msra.mxu0 0.0
  %117 = vmatprep.subr.mxu0 0.0
  %118 = vmatpush1.msra.mxu0 0.0
  %119 = vmatprep.subr.mxu0 0.0
  %120 = vmatpush1.msra.mxu0 0.0
  %121 = vmatprep.subr.mxu0 0.0
  %122 = vmatpush1.msra.mxu0 0.0
  %123 = vmatprep.subr.mxu0 0.0
  %124 = vmatpush1.msra.mxu0 0.0
  %125 = vmatprep.subr.mxu0 0.0
  %126 = vmatpush1.msra.mxu0 0.0
  %127 = vmatprep.subr.mxu0 0.0
  %128 = vmatpush1.msra.mxu0 0.0
  %129 = vmatprep.subr.mxu0 0.0
  %130 = vmatpush1.msra.mxu0 0.0
  %131 = vmatprep.subr.mxu0 0.0
  %132 = vmatpush1.msra.mxu0 0.0
  %133 = vmatprep.subr.mxu0 0.0
  %134 = vmatpush1.msra.mxu0 0.0
  %135 = vmatprep.subr.mxu0 0.0
  %136 = vmatpush1.msra.mxu0 0.0
  %137 = vmatprep.subr.mxu0 0.0
  %138 = vmatpush1.msra.mxu0 0.0
  %139 = vmatprep.subr.mxu0 0.0
  %140 = vmatpush1.msra.mxu0 0.0
  %141 = vmatprep.subr.mxu0 0.0
  %142 = vmatpush1.msra.mxu0 0.0
  %143 = vmatprep.subr.mxu0 0.0
  %144 = vmatpush1.msra.mxu0 0.0
  %145 = vmatprep.subr.mxu0 0.0
  %146 = vmatpush1.msra.mxu0 0.0
  %147 = vmatprep.subr.mxu0 0.0
  %148 = vmatpush1.msra.mxu0 0.0
  %149 = vmatprep.subr.mxu0 0.0
  %150 = vmatpush1.msra.mxu0 0.0
  %151 = vmatprep.subr.mxu0 0.0
  %152 = vmatpush1.msra.mxu0 0.0
  %153 = vmatprep.subr.mxu0 0.0
  %154 = vmatpush1.msra.mxu0 0.0
  %155 = vmatprep.subr.mxu0 0.0
  %156 = vmatpush1.msra.mxu0 0.0
  %157 = vmatprep.subr.mxu0 0.0
  %158 = vmatpush1.msra.mxu0 0.0
  %159 = vmatprep.mubr.f32.mxu0 0.0
  %160 = vmatmul.mubr.f32.gmra.mrb[0].mxu0 %v44
  %v161 = vpop.f32.mrb[0].mxu0
  %v162 = vadd.f32 %v40, %v161
  %v163 = vpop.f32.mrb[0].mxu0
  %164 = vmatprep.mubr.f32.mxu0 0.0
  %165 = vmatmul.mubr.f32.gmra.mrb[0].mxu0 %v47
  %v166 = vpop.f32.mrb[0].mxu0
  %v167 = vadd.f32 %v40, %v166
  %v168 = vpop.f32.mrb[0].mxu0
  %169 = vmatprep.mubr.f32.mxu0 0.0
  %170 = vmatmul.mubr.f32.gmra.mrb[0].mxu0 %v50
  %v171 = vpop.f32.mrb[0].mxu0
  %v172 = vadd.f32 %v40, %v171
  %v173 = vpop.f32.mrb[0].mxu0
  %174 = vmatprep.mubr.f32.mxu0 0.0
  %175 = vmatmul.mubr.f32.gmra.mrb[0].mxu0 %v53
  %v176 = vpop.f32.mrb[0].mxu0
  %v177 = vadd.f32 %v40, %v176
  %v178 = vpop.f32.mrb[0].mxu0
  %179 = vmatprep.mubr.f32.mxu0 0.0
  %180 = vmatmul.mubr.f32.gmra.mrb[0].mxu0 %v56
  %v181 = vpop.f32.mrb[0].mxu0
  %v182 = vadd.f32 %v40, %v181
  %v183 = vpop.f32.mrb[0].mxu0
  %184 = vmatprep.mubr.f32.mxu0 0.0
  %185 = vmatmul.mubr.f32.gmra.mrb[0].mxu0 %v59
  %v186 = vpop.f32.mrb[0].mxu0
  %v187 = vadd.f32 %v40, %v186
  %v188 = vpop.f32.mrb[0].mxu0
  %189 = vmatprep.mubr.f32.mxu0 0.0
  %190 = vmatmul.mubr.f32.gmra.mrb[0].mxu0 %v62
  %v191 = vpop.f32.mrb[0].mxu0
  %v192 = vadd.f32 %v40, %v191
  %v193 = vpop.f32.mrb[0].mxu0
  %194 = vmatprep.mubr.f32.mxu0 0.0
  %195 = vmatmul.mubr.f32.gmra.mrb[0].mxu0 %v65
  %v196 = vpop.f32.mrb[0].mxu0
  %v197 = vadd.f32 %v40, %v196
  %v198 = vpop.f32.mrb[0].mxu0
  %199 = vmatprep.mubr.f32.mxu0 0.0
  %200 = vmatmul.mubr.f32.gmra.mrb[0].mxu0 %v68
  %v201 = vpop.f32.mrb[0].mxu0
  %v202 = vadd.f32 %v40, %v201
  %v203 = vpop.f32.mrb[0].mxu0
  %204 = vmatprep.mubr.f32.mxu0 0.0
  %205 = vmatmul.mubr.f32.gmra.mrb[0].mxu0 %v71
  %v206 = vpop.f32.mrb[0].mxu0
  %v207 = vadd.f32 %v40, %v206
  %v208 = vpop.f32.mrb[0].mxu0
  %209 = vmatprep.mubr.f32.mxu0 0.0
  %210 = vmatmul.mubr.f32.gmra.mrb[0].mxu0 %v74
  %v211 = vpop.f32.mrb[0].mxu0
  %v212 = vadd.f32 %v40, %v211
  %v213 = vpop.f32.mrb[0].mxu0
  %214 = vmatprep.mubr.f32.mxu0 0.0
  %215 = vmatmul.mubr.f32.gmra.mrb[0].mxu0 %v77
  %v216 = vpop.f32.mrb[0].mxu0
  %v217 = vadd.f32 %v40, %v216
  %v218 = vpop.f32.mrb[0].mxu0
  %219 = vmatprep.mubr.f32.mxu0 0.0
  %220 = vmatmul.mubr.f32.gmra.mrb[0].mxu0 %v80
  %v221 = vpop.f32.mrb[0].mxu0
  %v222 = vadd.f32 %v40, %v221
  %v223 = vpop.f32.mrb[0].mxu0
  %224 = vmatprep.mubr.f32.mxu0 0.0
  %225 = vmatmul.mubr.f32.gmra.mrb[0].mxu0 %v83
  %v226 = vpop.f32.mrb[0].mxu0
  %v227 = vadd.f32 %v40, %v226
  %v228 = vpop.f32.mrb[0].mxu0
  %229 = vmatprep.mubr.f32.mxu0 0.0
  %230 = vmatmul.mubr.f32.gmra.mrb[0].mxu0 %v86
  %v231 = vpop.f32.mrb[0].mxu0
  %v232 = vadd.f32 %v40, %v231
  %v233 = vpop.f32.mrb[0].mxu0
  %234 = vmatprep.mubr.f32.mxu0 0.0
  %235 = vmatmul.mubr.f32.gmra.mrb[0].mxu0 %v89
  %v236 = vpop.f32.mrb[0].mxu0
  %v237 = vadd.f32 %v40, %v236
  %v238 = vpop.f32.mrb[0].mxu0
  %239 = vdwg.mxu0
  %vm240 = vcmp.ge.f32.partialorder %v162, 0.0
  %vm241 = vcmp.ge.f32.partialorder %v167, 0.0
  %vm242 = vcmp.ge.f32.partialorder %v172, 0.0
  %vm243 = vcmp.ge.f32.partialorder %v177, 0.0
  %vm244 = vcmp.ge.f32.partialorder %v182, 0.0
  %vm245 = vcmp.ge.f32.partialorder %v187, 0.0
  %vm246 = vcmp.ge.f32.partialorder %v192, 0.0
  %vm247 = vcmp.ge.f32.partialorder %v197, 0.0
  %vm248 = vcmp.ge.f32.partialorder %v202, 0.0
  %vm249 = vcmp.ge.f32.partialorder %v207, 0.0
  %vm250 = vcmp.ge.f32.partialorder %v212, 0.0
  %vm251 = vcmp.ge.f32.partialorder %v217, 0.0
  %vm252 = vcmp.ge.f32.partialorder %v222, 0.0
  %vm253 = vcmp.ge.f32.partialorder %v227, 0.0
  %vm254 = vcmp.ge.f32.partialorder %v232, 0.0
  %vm255 = vcmp.ge.f32.partialorder %v237, 0.0
  %v256 = vmul.f32 %v162, 0.1
  %v257 = vmul.f32 %v167, 0.1
  %v258 = vmul.f32 %v172, 0.1
  %v259 = vmul.f32 %v177, 0.1
  %v260 = vmul.f32 %v182, 0.1
  %v261 = vmul.f32 %v187, 0.1
  %v262 = vmul.f32 %v192, 0.1
  %v263 = vmul.f32 %v197, 0.1
  %v264 = vmul.f32 %v202, 0.1
  %v265 = vmul.f32 %v207, 0.1
  %v266 = vmul.f32 %v212, 0.1
  %v267 = vmul.f32 %v217, 0.1
  %v268 = vmul.f32 %v222, 0.1
  %v269 = vmul.f32 %v227, 0.1
  %v270 = vmul.f32 %v232, 0.1
  %v271 = vmul.f32 %v237, 0.1
  %v272 = vsel %vm240, %v162, %v256
  %v273 = vsel %vm241, %v167, %v257
  %v274 = vsel %vm242, %v172, %v258
  %v275 = vsel %vm243, %v177, %v259
  %v276 = vsel %vm244, %v182, %v260
  %v277 = vsel %vm245, %v187, %v261
  %v278 = vsel %vm246, %v192, %v262
  %v279 = vsel %vm247, %v197, %v263
  %v280 = vsel %vm248, %v202, %v264
  %v281 = vsel %vm249, %v207, %v265
  %v282 = vsel %vm250, %v212, %v266
  %v283 = vsel %vm251, %v217, %v267
  %v284 = vsel %vm252, %v222, %v268
  %v285 = vsel %vm253, %v227, %v269
  %v286 = vsel %vm254, %v232, %v270
  %v287 = vsel %vm255, %v237, %v271
  %vm288 = vcmask 64512
  %289 = vst.msk [vmem:[%s3] sm:$0xff] %vm288, %v272
  %290 = vst.msk [vmem:[%s3 + $0x8] sm:$0xff] %vm288, %v273
  %291 = vst.msk [vmem:[%s3 + $0x10] sm:$0xff] %vm288, %v274
  %292 = vst.msk [vmem:[%s3 + $0x18] sm:$0xff] %vm288, %v275
  %293 = vst.msk [vmem:[%s3 + $0x20] sm:$0xff] %vm288, %v276
  %294 = vst.msk [vmem:[%s3 + $0x28] sm:$0xff] %vm288, %v277
  %295 = vst.msk [vmem:[%s3 + $0x30] sm:$0xff] %vm288, %v278
  %296 = vst.msk [vmem:[%s3 + $0x38] sm:$0xff] %vm288, %v279
  %297 = vst.msk [vmem:[%s3 + $0x40] sm:$0xff] %vm288, %v280
  %298 = vst.msk [vmem:[%s3 + $0x48] sm:$0xff] %vm288, %v281
  %299 = vst.msk [vmem:[%s3 + $0x50] sm:$0xff] %vm288, %v282
  %300 = vst.msk [vmem:[%s3 + $0x58] sm:$0xff] %vm288, %v283
  %301 = vst.msk [vmem:[%s3 + $0x60] sm:$0xff] %vm288, %v284
  %302 = vst.msk [vmem:[%s3 + $0x68] sm:$0xff] %vm288, %v285
  %303 = vst.msk [vmem:[%s3 + $0x70] sm:$0xff] %vm288, %v286
  %304 = vst.msk [vmem:[%s3 + $0x78] sm:$0xff] %vm288, %v287
  // Predicated region
  $region14: #{feature_pyramid_forward.4} parent=0 // pred_check
    _
  $region15: #{feature_pyramid_forward.4} parent=0 // pred_check_branch
    %306 = sbr.rel (0) target = $region17
  $region16: #{feature_pyramid_forward.4} parent=0 // pred_region
    _
  $region17: #{feature_pyramid_forward.4} parent=0 // pred_fallthru
    _
  // Predicated region
  $region18: #{feature_pyramid_forward.4} parent=0 // pred_check
    _
  $region19: #{feature_pyramid_forward.4} parent=0 // pred_check_branch
    %308 = sbr.rel (0) target = $region21
  $region20: #{feature_pyramid_forward.4} parent=0 // pred_region
    _
  $region21: #{feature_pyramid_forward.4} parent=0 // pred_fallthru
    _

// kernel: feature_pyramid_forward.5
$region0: #{feature_pyramid_forward.5}
  #allocation0 [shape = 'u32[]', space=smem, size = 0x4, offset = 0x4, fixed_abs, tag = 'smem constant byte address 0x4 - core index']
  #allocation1 [shape = 'u32[144,128]{1,0:T(1,128)}', space=vmem, size = 0x12000, scoped, tag = 'internal scratch']
  %s0 = inlined_call_operand.vmem [shape: f32[128,72], index: 0, kind: input, shape index: {}]
  %s1 = inlined_call_operand.vmem [shape: f32[128,4], index: 1, kind: input, shape index: {}]
  %s2 = inlined_call_operand.vmem [shape: f32[72,8], index: 2, kind: input, shape index: {}]
  %s3 = inlined_call_operand.vmem [shape: f32[4,8], index: 3, kind: input, shape index: {}]
  %s4 = inlined_call_operand.vmem [shape: f32[1,8], index: 4, kind: input, shape index: {}]
  %s5 = inlined_call_operand.vmem [shape: f32[128,8], index: 5, kind: output, shape index: {}]
  %s6 = sld [smem:[#allocation0]]
  $region30: #{feature_pyramid_forward.5} parent=0
    _
  %s8 = ssub.s32 1, %s6
  %s9 = scalar_select 0, %s8, %s6
  // Predicated region
  $region2: #{feature_pyramid_forward.5} parent=0 // pred_check
    _
  $region3: #{feature_pyramid_forward.5} parent=0 // pred_check_branch
    %11 = sbr.rel (0) target = $region5
  $region4: #{feature_pyramid_forward.5} parent=0 // pred_region
    _
  $region5: #{feature_pyramid_forward.5} parent=0 // pred_fallthru
    _
  // Predicated region
  $region6: #{feature_pyramid_forward.5} parent=0 // pred_check
    _
  $region7: #{feature_pyramid_forward.5} parent=0 // pred_check_branch
    %13 = sbr.rel (0) target = $region9
  $region8: #{feature_pyramid_forward.5} parent=0 // pred_region
    _
  $region9: #{feature_pyramid_forward.5} parent=0 // pred_fallthru
    _
  // Predicated region
  $region10: #{feature_pyramid_forward.5} parent=0 // pred_check
    _
  $region11: #{feature_pyramid_forward.5} parent=0 // pred_check_branch
    %15 = sbr.rel (0) target = $region13
  $region12: #{feature_pyramid_forward.5} parent=0 // pred_region
    _
  $region13: #{feature_pyramid_forward.5} parent=0 // pred_fallthru
    _
  // Predicated region
  $region14: #{feature_pyramid_forward.5} parent=0 // pred_check
    _
  $region15: #{feature_pyramid_forward.5} parent=0 // pred_check_branch
    %17 = sbr.rel (0) target = $region17
  $region16: #{feature_pyramid_forward.5} parent=0 // pred_region
    _
  $region17: #{feature_pyramid_forward.5} parent=0 // pred_fallthru
    _
  // Predicated region
  $region18: #{feature_pyramid_forward.5} parent=0 // pred_check
    _
  $region19: #{feature_pyramid_forward.5} parent=0 // pred_check_branch
    %19 = sbr.rel (0) target = $region21
  $region20: #{feature_pyramid_forward.5} parent=0 // pred_region
    _
  $region21: #{feature_pyramid_forward.5} parent=0 // pred_fallthru
    _
  %v20 = vld [vmem:[%s0] sm:$0xff]
  %v21 = vld [vmem:[%s0 + $0x8] sm:$0xff]
  %v22 = vld [vmem:[%s0 + $0x10] sm:$0xff]
  %v23 = vld [vmem:[%s0 + $0x18] sm:$0xff]
  %v24 = vld [vmem:[%s0 + $0x20] sm:$0xff]
  %v25 = vld [vmem:[%s0 + $0x28] sm:$0xff]
  %v26 = vld [vmem:[%s0 + $0x30] sm:$0xff]
  %v27 = vld [vmem:[%s0 + $0x38] sm:$0xff]
  %v28 = vld [vmem:[%s0 + $0x40] sm:$0xff]
  %v29 = vld [vmem:[%s0 + $0x48] sm:$0xff]
  %v30 = vld [vmem:[%s0 + $0x50] sm:$0xff]
  %v31 = vld [vmem:[%s0 + $0x58] sm:$0xff]
  %v32 = vld [vmem:[%s0 + $0x60] sm:$0xff]
  %v33 = vld [vmem:[%s0 + $0x68] sm:$0xff]
  %v34 = vld [vmem:[%s0 + $0x70] sm:$0xff]
  %v35 = vld [vmem:[%s0 + $0x78] sm:$0xff]
  %v36 = vld [vmem:[%s2] sm:$0xff]
  %v37 = vld [vmem:[%s2 + $0x8] sm:$0xff]
  %v38 = vld [vmem:[%s2 + $0x10] sm:$0xff]
  %v39 = vld [vmem:[%s2 + $0x18] sm:$0xff]
  %v40 = vld [vmem:[%s2 + $0x20] sm:$0xff]
  %v41 = vld [vmem:[%s2 + $0x28] sm:$0xff]
  %v42 = vld [vmem:[%s2 + $0x30] sm:$0xff]
  %v43 = vld [vmem:[%s2 + $0x38] sm:$0xff]
  %v44 = vld [vmem:[%s2 + $0x40] sm:$0xff]
  %v45 = vld [vmem:[%s1] sm:$0xff]
  %v46 = vld [vmem:[%s1 + $0x8] sm:$0xff]
  %v47 = vld [vmem:[%s1 + $0x10] sm:$0xff]
  %v48 = vld [vmem:[%s1 + $0x18] sm:$0xff]
  %v49 = vld [vmem:[%s1 + $0x20] sm:$0xff]
  %v50 = vld [vmem:[%s1 + $0x28] sm:$0xff]
  %v51 = vld [vmem:[%s1 + $0x30] sm:$0xff]
  %v52 = vld [vmem:[%s1 + $0x38] sm:$0xff]
  %v53 = vld [vmem:[%s1 + $0x40] sm:$0xff]
  %v54 = vld [vmem:[%s1 + $0x48] sm:$0xff]
  %v55 = vld [vmem:[%s1 + $0x50] sm:$0xff]
  %v56 = vld [vmem:[%s1 + $0x58] sm:$0xff]
  %v57 = vld [vmem:[%s1 + $0x60] sm:$0xff]
  %v58 = vld [vmem:[%s1 + $0x68] sm:$0xff]
  %v59 = vld [vmem:[%s1 + $0x70] sm:$0xff]
  %v60 = vld [vmem:[%s1 + $0x78] sm:$0xff]
  %v61 = vld [vmem:[%s3] sm:$0xf]
  %vm62 = vcmask 31744
  %v64 = vsel %vm62, %v45, 0
  %v67 = vsel %vm62, %v46, 0
  %v70 = vsel %vm62, %v47, 0
  %v73 = vsel %vm62, %v48, 0
  %v76 = vsel %vm62, %v49, 0
  %v79 = vsel %vm62, %v50, 0
  %v82 = vsel %vm62, %v51, 0
  %v85 = vsel %vm62, %v52, 0
  %v88 = vsel %vm62, %v53, 0
  %v91 = vsel %vm62, %v54, 0
  %v94 = vsel %vm62, %v55, 0
  %v97 = vsel %vm62, %v56, 0
  %v100 = vsel %vm62, %v57, 0
  %v103 = vsel %vm62, %v58, 0
  %v106 = vsel %vm62, %v59, 0
  %v109 = vsel %vm62, %v60, 0
  %vm111 = vcmask 1043456
  %v113 = vsel %vm111, %v61, 0
  %115 = vmatprep.subr.mxu0 0.0
  %116 = vmatpush1.msra.mxu0 %v113
  %117 = vmatprep.subr.mxu0 0.0
  %118 = vmatpush1.msra.mxu0 0.0
  %119 = vmatprep.subr.mxu0 0.0
  %120 = vmatpush1.msra.mxu0 0.0
  %121 = vmatprep.subr.mxu0 0.0
  %122 = vmatpush1.msra.mxu0 0.0
  %123 = vmatprep.subr.mxu0 0.0
  %124 = vmatpush1.msra.mxu0 0.0
  %125 = vmatprep.subr.mxu0 0.0
  %126 = vmatpush1.msra.mxu0 0.0
  %127 = vmatprep.subr.mxu0 0.0
  %128 = vmatpush1.msra.mxu0 0.0
  %129 = vmatprep.subr.mxu0 0.0
  %130 = vmatpush1.msra.mxu0 0.0
  %131 = vmatprep.subr.mxu0 0.0
  %132 = vmatpush1.msra.mxu0 0.0
  %133 = vmatprep.subr.mxu0 0.0
  %134 = vmatpush1.msra.mxu0 0.0
  %135 = vmatprep.subr.mxu0 0.0
  %136 = vmatpush1.msra.mxu0 0.0
  %137 = vmatprep.subr.mxu0 0.0
  %138 = vmatpush1.msra.mxu0 0.0
  %139 = vmatprep.subr.mxu0 0.0
  %140 = vmatpush1.msra.mxu0 0.0
  %141 = vmatprep.subr.mxu0 0.0
  %142 = vmatpush1.msra.mxu0 0.0
  %143 = vmatprep.subr.mxu0 0.0
  %144 = vmatpush1.msra.mxu0 0.0
  %145 = vmatprep.subr.mxu0 0.0
  %146 = vmatpush1.msra.mxu0 0.0
  %147 = vmatprep.subr.mxu0 0.0
  %148 = vmatpush1.msra.mxu0 0.0
  %149 = vmatprep.subr.mxu0 0.0
  %150 = vmatpush1.msra.mxu0 0.0
  %151 = vmatprep.subr.mxu0 0.0
  %152 = vmatpush1.msra.mxu0 0.0
  %153 = vmatprep.subr.mxu0 0.0
  %154 = vmatpush1.msra.mxu0 0.0
  %155 = vmatprep.subr.mxu0 0.0
  %156 = vmatpush1.msra.mxu0 0.0
  %157 = vmatprep.subr.mxu0 0.0
  %158 = vmatpush1.msra.mxu0 0.0
  %159 = vmatprep.subr.mxu0 0.0
  %160 = vmatpush1.msra.mxu0 0.0
  %161 = vmatprep.subr.mxu0 0.0
  %162 = vmatpush1.msra.mxu0 0.0
  %163 = vmatprep.subr.mxu0 0.0
  %164 = vmatpush1.msra.mxu0 0.0
  %165 = vmatprep.subr.mxu0 0.0
  %166 = vmatpush1.msra.mxu0 0.0
  %167 = vmatprep.subr.mxu0 0.0
  %168 = vmatpush1.msra.mxu0 0.0
  %169 = vmatprep.subr.mxu0 0.0
  %170 = vmatpush1.msra.mxu0 0.0
  %171 = vmatprep.subr.mxu0 0.0
  %172 = vmatpush1.msra.mxu0 0.0
  %173 = vmatprep.subr.mxu0 0.0
  %174 = vmatpush1.msra.mxu0 0.0
  %175 = vmatprep.subr.mxu0 0.0
  %176 = vmatpush1.msra.mxu0 0.0
  %177 = vmatprep.subr.mxu0 0.0
  %178 = vmatpush1.msra.mxu0 0.0
  %179 = vmatprep.mubr.f32.mxu0 0.0
  %180 = vmatmul.mubr.f32.gmra.mrb[0].mxu0 %v64
  %v181 = vpop.f32.mrb[0].mxu0
  %v182 = vadd.f32 0.0, %v181
  %v183 = vpop.f32.mrb[0].mxu0
  %184 = vmatprep.mubr.f32.mxu0 0.0
  %185 = vmatmul.mubr.f32.gmra.mrb[0].mxu0 %v67
  %v186 = vpop.f32.mrb[0].mxu0
  %v187 = vadd.f32 0.0, %v186
  %v188 = vpop.f32.mrb[0].mxu0
  %189 = vmatprep.mubr.f32.mxu0 0.0
  %190 = vmatmul.mubr.f32.gmra.mrb[0].mxu0 %v70
  %v191 = vpop.f32.mrb[0].mxu0
  %v192 = vadd.f32 0.0, %v191
  %v193 = vpop.f32.mrb[0].mxu0
  %194 = vmatprep.mubr.f32.mxu0 0.0
  %195 = vmatmul.mubr.f32.gmra.mrb[0].mxu0 %v73
  %v196 = vpop.f32.mrb[0].mxu0
  %v197 = vadd.f32 0.0, %v196
  %v198 = vpop.f32.mrb[0].mxu0
  %199 = vmatprep.mubr.f32.mxu0 0.0
  %200 = vmatmul.mubr.f32.gmra.mrb[0].mxu0 %v76
  %v201 = vpop.f32.mrb[0].mxu0
  %v202 = vadd.f32 0.0, %v201
  %v203 = vpop.f32.mrb[0].mxu0
  %204 = vmatprep.mubr.f32.mxu0 0.0
  %205 = vmatmul.mubr.f32.gmra.mrb[0].mxu0 %v79
  %v206 = vpop.f32.mrb[0].mxu0
  %v207 = vadd.f32 0.0, %v206
  %v208 = vpop.f32.mrb[0].mxu0
  %209 = vmatprep.mubr.f32.mxu0 0.0
  %210 = vmatmul.mubr.f32.gmra.mrb[0].mxu0 %v82
  %v211 = vpop.f32.mrb[0].mxu0
  %v212 = vadd.f32 0.0, %v211
  %v213 = vpop.f32.mrb[0].mxu0
  %214 = vmatprep.mubr.f32.mxu0 0.0
  %215 = vmatmul.mubr.f32.gmra.mrb[0].mxu0 %v85
  %v216 = vpop.f32.mrb[0].mxu0
  %v217 = vadd.f32 0.0, %v216
  %v218 = vpop.f32.mrb[0].mxu0
  %219 = vmatprep.mubr.f32.mxu0 0.0
  %220 = vmatmul.mubr.f32.gmra.mrb[0].mxu0 %v88
  %v221 = vpop.f32.mrb[0].mxu0
  %v222 = vadd.f32 0.0, %v221
  %v223 = vpop.f32.mrb[0].mxu0
  %224 = vmatprep.mubr.f32.mxu0 0.0
  %225 = vmatmul.mubr.f32.gmra.mrb[0].mxu0 %v91
  %v226 = vpop.f32.mrb[0].mxu0
  %v227 = vadd.f32 0.0, %v226
  %v228 = vpop.f32.mrb[0].mxu0
  %229 = vmatprep.mubr.f32.mxu0 0.0
  %230 = vmatmul.mubr.f32.gmra.mrb[0].mxu0 %v94
  %v231 = vpop.f32.mrb[0].mxu0
  %v232 = vadd.f32 0.0, %v231
  %v233 = vpop.f32.mrb[0].mxu0
  %234 = vmatprep.mubr.f32.mxu0 0.0
  %235 = vmatmul.mubr.f32.gmra.mrb[0].mxu0 %v97
  %v236 = vpop.f32.mrb[0].mxu0
  %v237 = vadd.f32 0.0, %v236
  %v238 = vpop.f32.mrb[0].mxu0
  %239 = vmatprep.mubr.f32.mxu0 0.0
  %240 = vmatmul.mubr.f32.gmra.mrb[0].mxu0 %v100
  %v241 = vpop.f32.mrb[0].mxu0
  %v242 = vadd.f32 0.0, %v241
  %v243 = vpop.f32.mrb[0].mxu0
  %244 = vmatprep.mubr.f32.mxu0 0.0
  %245 = vmatmul.mubr.f32.gmra.mrb[0].mxu0 %v103
  %v246 = vpop.f32.mrb[0].mxu0
  %v247 = vadd.f32 0.0, %v246
  %v248 = vpop.f32.mrb[0].mxu0
  %249 = vmatprep.mubr.f32.mxu0 0.0
  %250 = vmatmul.mubr.f32.gmra.mrb[0].mxu0 %v106
  %v251 = vpop.f32.mrb[0].mxu0
  %v252 = vadd.f32 0.0, %v251
  %v253 = vpop.f32.mrb[0].mxu0
  %254 = vmatprep.mubr.f32.mxu0 0.0
  %255 = vmatmul.mubr.f32.gmra.mrb[0].mxu0 %v109
  %v256 = vpop.f32.mrb[0].mxu0
  %v257 = vadd.f32 0.0, %v256
  %v258 = vpop.f32.mrb[0].mxu0
  %259 = vdwg.mxu0
  %vm260 = vcmask 588800
  %v262 = vsel %vm260, %v20, 0
  %v265 = vsel %vm260, %v21, 0
  %v268 = vsel %vm260, %v22, 0
  %v271 = vsel %vm260, %v23, 0
  %v274 = vsel %vm260, %v24, 0
  %v277 = vsel %vm260, %v25, 0
  %v280 = vsel %vm260, %v26, 0
  %v283 = vsel %vm260, %v27, 0
  %v286 = vsel %vm260, %v28, 0
  %v289 = vsel %vm260, %v29, 0
  %v292 = vsel %vm260, %v30, 0
  %v295 = vsel %vm260, %v31, 0
  %v298 = vsel %vm260, %v32, 0
  %v301 = vsel %vm260, %v33, 0
  %v304 = vsel %vm260, %v34, 0
  %v307 = vsel %vm260, %v35, 0
  %309 = vmatprep.subr.mxu0 0.0
  %310 = vmatpush1.msra.mxu0 %v36
  %311 = vmatprep.subr.mxu0 0.0
  %312 = vmatpush1.msra.mxu0 %v37
  %313 = vmatprep.subr.mxu0 0.0
  %314 = vmatpush1.msra.mxu0 %v38
  %315 = vmatprep.subr.mxu0 0.0
  %316 = vmatpush1.msra.mxu0 %v39
  %317 = vmatprep.subr.mxu0 0.0
  %318 = vmatpush1.msra.mxu0 %v40
  %319 = vmatprep.subr.mxu0 0.0
  %320 = vmatpush1.msra.mxu0 %v41
  %321 = vmatprep.subr.mxu0 0.0
  %322 = vmatpush1.msra.mxu0 %v42
  %323 = vmatprep.subr.mxu0 0.0
  %324 = vmatpush1.msra.mxu0 %v43
  %325 = vmatprep.subr.mxu0 0.0
  %326 = vmatpush1.msra.mxu0 %v44
  %327 = vmatprep.subr.mxu0 0.0
  %328 = vmatpush1.msra.mxu0 0.0
  %329 = vmatprep.subr.mxu0 0.0
  %330 = vmatpush1.msra.mxu0 0.0
  %331 = vmatprep.subr.mxu0 0.0
  %332 = vmatpush1.msra.mxu0 0.0
  %333 = vmatprep.subr.mxu0 0.0
  %334 = vmatpush1.msra.mxu0 0.0
  %335 = vmatprep.subr.mxu0 0.0
  %336 = vmatpush1.msra.mxu0 0.0
  %337 = vmatprep.subr.mxu0 0.0
  %338 = vmatpush1.msra.mxu0 0.0
  %339 = vmatprep.subr.mxu0 0.0
  %340 = vmatpush1.msra.mxu0 0.0
  %341 = vmatprep.subr.mxu0 0.0
  %342 = vmatpush1.msra.mxu0 0.0
  %343 = vmatprep.subr.mxu0 0.0
  %344 = vmatpush1.msra.mxu0 0.0
  %345 = vmatprep.subr.mxu0 0.0
  %346 = vmatpush1.msra.mxu0 0.0
  %347 = vmatprep.subr.mxu0 0.0
  %348 = vmatpush1.msra.mxu0 0.0
  %349 = vmatprep.subr.mxu0 0.0
  %350 = vmatpush1.msra.mxu0 0.0
  %351 = vmatprep.subr.mxu0 0.0
  %352 = vmatpush1.msra.mxu0 0.0
  %353 = vmatprep.subr.mxu0 0.0
  %354 = vmatpush1.msra.mxu0 0.0
  %355 = vmatprep.subr.mxu0 0.0
  %356 = vmatpush1.msra.mxu0 0.0
  %357 = vmatprep.subr.mxu0 0.0
  %358 = vmatpush1.msra.mxu0 0.0
  %359 = vmatprep.subr.mxu0 0.0
  %360 = vmatpush1.msra.mxu0 0.0
  %361 = vmatprep.subr.mxu0 0.0
  %362 = vmatpush1.msra.mxu0 0.0
  %363 = vmatprep.subr.mxu0 0.0
  %364 = vmatpush1.msra.mxu0 0.0
  %365 = vmatprep.subr.mxu0 0.0
  %366 = vmatpush1.msra.mxu0 0.0
  %367 = vmatprep.subr.mxu0 0.0
  %368 = vmatpush1.msra.mxu0 0.0
  %369 = vmatprep.subr.mxu0 0.0
  %370 = vmatpush1.msra.mxu0 0.0
  %371 = vmatprep.subr.mxu0 0.0
  %372 = vmatpush1.msra.mxu0 0.0
  %373 = vmatprep.mubr.f32.mxu0 0.0
  %374 = vmatmul.mubr.f32.gmra.mrb[0].mxu0 %v262
  %v375 = vpop.f32.mrb[0].mxu0
  %v376 = vadd.f32 %v182, %v375
  %v377 = vpop.f32.mrb[0].mxu0
  %378 = vmatprep.mubr.f32.mxu0 0.0
  %379 = vmatmul.mubr.f32.gmra.mrb[0].mxu0 %v265
  %v380 = vpop.f32.mrb[0].mxu0
  %v381 = vadd.f32 %v187, %v380
  %v382 = vpop.f32.mrb[0].mxu0
  %383 = vmatprep.mubr.f32.mxu0 0.0
  %384 = vmatmul.mubr.f32.gmra.mrb[0].mxu0 %v268
  %v385 = vpop.f32.mrb[0].mxu0
  %v386 = vadd.f32 %v192, %v385
  %v387 = vpop.f32.mrb[0].mxu0
  %388 = vmatprep.mubr.f32.mxu0 0.0
  %389 = vmatmul.mubr.f32.gmra.mrb[0].mxu0 %v271
  %v390 = vpop.f32.mrb[0].mxu0
  %v391 = vadd.f32 %v197, %v390
  %v392 = vpop.f32.mrb[0].mxu0
  %393 = vmatprep.mubr.f32.mxu0 0.0
  %394 = vmatmul.mubr.f32.gmra.mrb[0].mxu0 %v274
  %v395 = vpop.f32.mrb[0].mxu0
  %v396 = vadd.f32 %v202, %v395
  %v397 = vpop.f32.mrb[0].mxu0
  %398 = vmatprep.mubr.f32.mxu0 0.0
  %399 = vmatmul.mubr.f32.gmra.mrb[0].mxu0 %v277
  %v400 = vpop.f32.mrb[0].mxu0
  %v401 = vadd.f32 %v207, %v400
  %v402 = vpop.f32.mrb[0].mxu0
  %403 = vmatprep.mubr.f32.mxu0 0.0
  %404 = vmatmul.mubr.f32.gmra.mrb[0].mxu0 %v280
  %v405 = vpop.f32.mrb[0].mxu0
  %v406 = vadd.f32 %v212, %v405
  %v407 = vpop.f32.mrb[0].mxu0
  %408 = vmatprep.mubr.f32.mxu0 0.0
  %409 = vmatmul.mubr.f32.gmra.mrb[0].mxu0 %v283
  %v410 = vpop.f32.mrb[0].mxu0
  %v411 = vadd.f32 %v217, %v410
  %v412 = vpop.f32.mrb[0].mxu0
  %413 = vmatprep.mubr.f32.mxu0 0.0
  %414 = vmatmul.mubr.f32.gmra.mrb[0].mxu0 %v286
  %v415 = vpop.f32.mrb[0].mxu0
  %v416 = vadd.f32 %v222, %v415
  %v417 = vpop.f32.mrb[0].mxu0
  %418 = vmatprep.mubr.f32.mxu0 0.0
  %419 = vmatmul.mubr.f32.gmra.mrb[0].mxu0 %v289
  %v420 = vpop.f32.mrb[0].mxu0
  %v421 = vadd.f32 %v227, %v420
  %v422 = vpop.f32.mrb[0].mxu0
  %423 = vmatprep.mubr.f32.mxu0 0.0
  %424 = vmatmul.mubr.f32.gmra.mrb[0].mxu0 %v292
  %v425 = vpop.f32.mrb[0].mxu0
  %v426 = vadd.f32 %v232, %v425
  %v427 = vpop.f32.mrb[0].mxu0
  %428 = vmatprep.mubr.f32.mxu0 0.0
  %429 = vmatmul.mubr.f32.gmra.mrb[0].mxu0 %v295
  %v430 = vpop.f32.mrb[0].mxu0
  %v431 = vadd.f32 %v237, %v430
  %v432 = vpop.f32.mrb[0].mxu0
  %433 = vmatprep.mubr.f32.mxu0 0.0
  %434 = vmatmul.mubr.f32.gmra.mrb[0].mxu0 %v298
  %v435 = vpop.f32.mrb[0].mxu0
  %v436 = vadd.f32 %v242, %v435
  %v437 = vpop.f32.mrb[0].mxu0
  %438 = vmatprep.mubr.f32.mxu0 0.0
  %439 = vmatmul.mubr.f32.gmra.mrb[0].mxu0 %v301
  %v440 = vpop.f32.mrb[0].mxu0
  %v441 = vadd.f32 %v247, %v440
  %v442 = vpop.f32.mrb[0].mxu0
  %443 = vmatprep.mubr.f32.mxu0 0.0
  %444 = vmatmul.mubr.f32.gmra.mrb[0].mxu0 %v304
  %v445 = vpop.f32.mrb[0].mxu0
  %v446 = vadd.f32 %v252, %v445
  %v447 = vpop.f32.mrb[0].mxu0
  %448 = vmatprep.mubr.f32.mxu0 0.0
  %449 = vmatmul.mubr.f32.gmra.mrb[0].mxu0 %v307
  %v450 = vpop.f32.mrb[0].mxu0
  %v451 = vadd.f32 %v257, %v450
  %v452 = vpop.f32.mrb[0].mxu0
  %453 = vdwg.mxu0
  %v454 = vld [vmem:[%s4] sm:$0x1]
  %v456 = vlaneseq
  %v457 = vshrl.u32 %v456, 7
  %v458 = vsub.s32 0, %v457
  %v459 = vrot.slane %v454, %v458
  %v461 = vadd.f32 %v376, %v459
  %v462 = vadd.f32 %v381, %v459
  %v463 = vadd.f32 %v386, %v459
  %v464 = vadd.f32 %v391, %v459
  %v465 = vadd.f32 %v396, %v459
  %v466 = vadd.f32 %v401, %v459
  %v467 = vadd.f32 %v406, %v459
  %v468 = vadd.f32 %v411, %v459
  %v469 = vadd.f32 %v416, %v459
  %v470 = vadd.f32 %v421, %v459
  %v471 = vadd.f32 %v426, %v459
  %v472 = vadd.f32 %v431, %v459
  %v473 = vadd.f32 %v436, %v459
  %v474 = vadd.f32 %v441, %v459
  %v475 = vadd.f32 %v446, %v459
  %v476 = vadd.f32 %v451, %v459
  %vm477 = vcmp.ge.f32.partialorder %v461, 0.0
  %vm478 = vcmp.ge.f32.partialorder %v462, 0.0
  %vm479 = vcmp.ge.f32.partialorder %v463, 0.0
  %vm480 = vcmp.ge.f32.partialorder %v464, 0.0
  %vm481 = vcmp.ge.f32.partialorder %v465, 0.0
  %vm482 = vcmp.ge.f32.partialorder %v466, 0.0
  %vm483 = vcmp.ge.f32.partialorder %v467, 0.0
  %vm484 = vcmp.ge.f32.partialorder %v468, 0.0
  %vm485 = vcmp.ge.f32.partialorder %v469, 0.0
  %vm486 = vcmp.ge.f32.partialorder %v470, 0.0
  %vm487 = vcmp.ge.f32.partialorder %v471, 0.0
  %vm488 = vcmp.ge.f32.partialorder %v472, 0.0
  %vm489 = vcmp.ge.f32.partialorder %v473, 0.0
  %vm490 = vcmp.ge.f32.partialorder %v474, 0.0
  %vm491 = vcmp.ge.f32.partialorder %v475, 0.0
  %vm492 = vcmp.ge.f32.partialorder %v476, 0.0
  %v493 = vmul.f32 %v461, 0.1
  %v494 = vmul.f32 %v462, 0.1
  %v495 = vmul.f32 %v463, 0.1
  %v496 = vmul.f32 %v464, 0.1
  %v497 = vmul.f32 %v465, 0.1
  %v498 = vmul.f32 %v466, 0.1
  %v499 = vmul.f32 %v467, 0.1
  %v500 = vmul.f32 %v468, 0.1
  %v501 = vmul.f32 %v469, 0.1
  %v502 = vmul.f32 %v470, 0.1
  %v503 = vmul.f32 %v471, 0.1
  %v504 = vmul.f32 %v472, 0.1
  %v505 = vmul.f32 %v473, 0.1
  %v506 = vmul.f32 %v474, 0.1
  %v507 = vmul.f32 %v475, 0.1
  %v508 = vmul.f32 %v476, 0.1
  %v509 = vsel %vm477, %v461, %v493
  %v510 = vsel %vm478, %v462, %v494
  %v511 = vsel %vm479, %v463, %v495
  %v512 = vsel %vm480, %v464, %v496
  %v513 = vsel %vm481, %v465, %v497
  %v514 = vsel %vm482, %v466, %v498
  %v515 = vsel %vm483, %v467, %v499
  %v516 = vsel %vm484, %v468, %v500
  %v517 = vsel %vm485, %v469, %v501
  %v518 = vsel %vm486, %v470, %v502
  %v519 = vsel %vm487, %v471, %v503
  %v520 = vsel %vm488, %v472, %v504
  %v521 = vsel %vm489, %v473, %v505
  %v522 = vsel %vm490, %v474, %v506
  %v523 = vsel %vm491, %v475, %v507
  %v524 = vsel %vm492, %v476, %v508
  %vm525 = vcmask 64512
  %526 = vst.msk [vmem:[%s5] sm:$0xff] %vm525, %v509
  %527 = vst.msk [vmem:[%s5 + $0x8] sm:$0xff] %vm525, %v510
  %528 = vst.msk [vmem:[%s5 + $0x10] sm:$0xff] %vm525, %v511
  %529 = vst.msk [vmem:[%s5 + $0x18] sm:$0xff] %vm525, %v512
  %530 = vst.msk [vmem:[%s5 + $0x20] sm:$0xff] %vm525, %v513
  %531 = vst.msk [vmem:[%s5 + $0x28] sm:$0xff] %vm525, %v514
  %532 = vst.msk [vmem:[%s5 + $0x30] sm:$0xff] %vm525, %v515
  %533 = vst.msk [vmem:[%s5 + $0x38] sm:$0xff] %vm525, %v516
  %534 = vst.msk [vmem:[%s5 + $0x40] sm:$0xff] %vm525, %v517
  %535 = vst.msk [vmem:[%s5 + $0x48] sm:$0xff] %vm525, %v518
  %536 = vst.msk [vmem:[%s5 + $0x50] sm:$0xff] %vm525, %v519
  %537 = vst.msk [vmem:[%s5 + $0x58] sm:$0xff] %vm525, %v520
  %538 = vst.msk [vmem:[%s5 + $0x60] sm:$0xff] %vm525, %v521
  %539 = vst.msk [vmem:[%s5 + $0x68] sm:$0xff] %vm525, %v522
  %540 = vst.msk [vmem:[%s5 + $0x70] sm:$0xff] %vm525, %v523
  %541 = vst.msk [vmem:[%s5 + $0x78] sm:$0xff] %vm525, %v524
  // Predicated region
  $region22: #{feature_pyramid_forward.5} parent=0 // pred_check
    _
  $region23: #{feature_pyramid_forward.5} parent=0 // pred_check_branch
    %543 = sbr.rel (0) target = $region25
  $region24: #{feature_pyramid_forward.5} parent=0 // pred_region
    _
  $region25: #{feature_pyramid_forward.5} parent=0 // pred_fallthru
    _
  // Predicated region
  $region26: #{feature_pyramid_forward.5} parent=0 // pred_check
    _
  $region27: #{feature_pyramid_forward.5} parent=0 // pred_check_branch
    %545 = sbr.rel (0) target = $region29
  $region28: #{feature_pyramid_forward.5} parent=0 // pred_region
    _
  $region29: #{feature_pyramid_forward.5} parent=0 // pred_fallthru
    _

// kernel: feature_pyramid_forward.6
$region0: #{feature_pyramid_forward.6}
  #allocation0 [shape = 'u32[]', space=smem, size = 0x4, offset = 0x4, fixed_abs, tag = 'smem constant byte address 0x4 - core index']
  #allocation1 [shape = 'u32[144,128]{1,0:T(1,128)}', space=vmem, size = 0x12000, scoped, tag = 'internal scratch']
  %s0 = inlined_call_operand.vmem [shape: f32[32,72], index: 0, kind: input, shape index: {}]
  %s1 = inlined_call_operand.vmem [shape: f32[72,16], index: 1, kind: input, shape index: {}]
  %s2 = inlined_call_operand.vmem [shape: f32[1,16], index: 2, kind: input, shape index: {}]
  %s3 = inlined_call_operand.vmem [shape: f32[32,16], index: 3, kind: output, shape index: {}]
  %s4 = sld [smem:[#allocation0]]
  $region22: #{feature_pyramid_forward.6} parent=0
    _
  %s6 = ssub.s32 1, %s4
  %s7 = scalar_select 0, %s6, %s4
  // Predicated region
  $region2: #{feature_pyramid_forward.6} parent=0 // pred_check
    _
  $region3: #{feature_pyramid_forward.6} parent=0 // pred_check_branch
    %9 = sbr.rel (0) target = $region5
  $region4: #{feature_pyramid_forward.6} parent=0 // pred_region
    _
  $region5: #{feature_pyramid_forward.6} parent=0 // pred_fallthru
    _
  // Predicated region
  $region6: #{feature_pyramid_forward.6} parent=0 // pred_check
    _
  $region7: #{feature_pyramid_forward.6} parent=0 // pred_check_branch
    %11 = sbr.rel (0) target = $region9
  $region8: #{feature_pyramid_forward.6} parent=0 // pred_region
    _
  $region9: #{feature_pyramid_forward.6} parent=0 // pred_fallthru
    _
  // Predicated region
  $region10: #{feature_pyramid_forward.6} parent=0 // pred_check
    _
  $region11: #{feature_pyramid_forward.6} parent=0 // pred_check_branch
    %13 = sbr.rel (0) target = $region13
  $region12: #{feature_pyramid_forward.6} parent=0 // pred_region
    _
  $region13: #{feature_pyramid_forward.6} parent=0 // pred_fallthru
    _
  %v14 = vld [vmem:[%s0] sm:$0xff]
  %v15 = vld [vmem:[%s0 + $0x8] sm:$0xff]
  %v16 = vld [vmem:[%s0 + $0x10] sm:$0xff]
  %v17 = vld [vmem:[%s0 + $0x18] sm:$0xff]
  %v18 = vld [vmem:[%s1] sm:$0xff]
  %v19 = vld [vmem:[%s1 + $0x8] sm:$0xff]
  %v20 = vld [vmem:[%s1 + $0x10] sm:$0xff]
  %v21 = vld [vmem:[%s1 + $0x18] sm:$0xff]
  %v22 = vld [vmem:[%s1 + $0x20] sm:$0xff]
  %v23 = vld [vmem:[%s1 + $0x28] sm:$0xff]
  %v24 = vld [vmem:[%s1 + $0x30] sm:$0xff]
  %v25 = vld [vmem:[%s1 + $0x38] sm:$0xff]
  %v26 = vld [vmem:[%s1 + $0x40] sm:$0xff]
  %v27 = vld [vmem:[%s2] sm:$0x1]
  %v29 = vlaneseq
  %v30 = vshrl.u32 %v29, 7
  %v31 = vsub.s32 0, %v30
  %v32 = vrot.slane %v27, %v31
  %vm34 = vcmask 588800
  %v36 = vsel %vm34, %v14, 0
  %v39 = vsel %vm34, %v15, 0
  %v42 = vsel %vm34, %v16, 0
  %v45 = vsel %vm34, %v17, 0
  %47 = vmatprep.subr.mxu0 0.0
  %48 = vmatpush1.msra.mxu0 %v18
  %49 = vmatprep.subr.mxu0 0.0
  %50 = vmatpush1.msra.mxu0 %v19
  %51 = vmatprep.subr.mxu0 0.0
  %52 = vmatpush1.msra.mxu0 %v20
  %53 = vmatprep.subr.mxu0 0.0
  %54 = vmatpush1.msra.mxu0 %v21
  %55 = vmatprep.subr.mxu0 0.0
  %56 = vmatpush1.msra.mxu0 %v22
  %57 = vmatprep.subr.mxu0 0.0
  %58 = vmatpush1.msra.mxu0 %v23
  %59 = vmatprep.subr.mxu0 0.0
  %60 = vmatpush1.msra.mxu0 %v24
  %61 = vmatprep.subr.mxu0 0.0
  %62 = vmatpush1.msra.mxu0 %v25
  %63 = vmatprep.subr.mxu0 0.0
  %64 = vmatpush1.msra.mxu0 %v26
  %65 = vmatprep.subr.mxu0 0.0
  %66 = vmatpush1.msra.mxu0 0.0
  %67 = vmatprep.subr.mxu0 0.0
  %68 = vmatpush1.msra.mxu0 0.0
  %69 = vmatprep.subr.mxu0 0.0
  %70 = vmatpush1.msra.mxu0 0.0
  %71 = vmatprep.subr.mxu0 0.0
  %72 = vmatpush1.msra.mxu0 0.0
  %73 = vmatprep.subr.mxu0 0.0
  %74 = vmatpush1.msra.mxu0 0.0
  %75 = vmatprep.subr.mxu0 0.0
  %76 = vmatpush1.msra.mxu0 0.0
  %77 = vmatprep.subr.mxu0 0.0
  %78 = vmatpush1.msra.mxu0 0.0
  %79 = vmatprep.subr.mxu0 0.0
  %80 = vmatpush1.msra.mxu0 0.0
  %81 = vmatprep.subr.mxu0 0.0
  %82 = vmatpush1.msra.mxu0 0.0
  %83 = vmatprep.subr.mxu0 0.0
  %84 = vmatpush1.msra.mxu0 0.0
  %85 = vmatprep.subr.mxu0 0.0
  %86 = vmatpush1.msra.mxu0 0.0
  %87 = vmatprep.subr.mxu0 0.0
  %88 = vmatpush1.msra.mxu0 0.0
  %89 = vmatprep.subr.mxu0 0.0
  %90 = vmatpush1.msra.mxu0 0.0
  %91 = vmatprep.subr.mxu0 0.0
  %92 = vmatpush1.msra.mxu0 0.0
  %93 = vmatprep.subr.mxu0 0.0
  %94 = vmatpush1.msra.mxu0 0.0
  %95 = vmatprep.subr.mxu0 0.0
  %96 = vmatpush1.msra.mxu0 0.0
  %97 = vmatprep.subr.mxu0 0.0
  %98 = vmatpush1.msra.mxu0 0.0
  %99 = vmatprep.subr.mxu0 0.0
  %100 = vmatpush1.msra.mxu0 0.0
  %101 = vmatprep.subr.mxu0 0.0
  %102 = vmatpush1.msra.mxu0 0.0
  %103 = vmatprep.subr.mxu0 0.0
  %104 = vmatpush1.msra.mxu0 0.0
  %105 = vmatprep.subr.mxu0 0.0
  %106 = vmatpush1.msra.mxu0 0.0
  %107 = vmatprep.subr.mxu0 0.0
  %108 = vmatpush1.msra.mxu0 0.0
  %109 = vmatprep.subr.mxu0 0.0
  %110 = vmatpush1.msra.mxu0 0.0
  %111 = vmatprep.mubr.f32.mxu0 0.0
  %112 = vmatmul.mubr.f32.gmra.mrb[0].mxu0 %v36
  %v113 = vpop.f32.mrb[0].mxu0
  %v114 = vadd.f32 %v32, %v113
  %v115 = vpop.f32.mrb[0].mxu0
  %116 = vmatprep.mubr.f32.mxu0 0.0
  %117 = vmatmul.mubr.f32.gmra.mrb[0].mxu0 %v39
  %v118 = vpop.f32.mrb[0].mxu0
  %v119 = vadd.f32 %v32, %v118
  %v120 = vpop.f32.mrb[0].mxu0
  %121 = vmatprep.mubr.f32.mxu0 0.0
  %122 = vmatmul.mubr.f32.gmra.mrb[0].mxu0 %v42
  %v123 = vpop.f32.mrb[0].mxu0
  %v124 = vadd.f32 %v32, %v123
  %v125 = vpop.f32.mrb[0].mxu0
  %126 = vmatprep.mubr.f32.mxu0 0.0
  %127 = vmatmul.mubr.f32.gmra.mrb[0].mxu0 %v45
  %v128 = vpop.f32.mrb[0].mxu0
  %v129 = vadd.f32 %v32, %v128
  %v130 = vpop.f32.mrb[0].mxu0
  %131 = vdwg.mxu0
  %vm132 = vcmp.ge.f32.partialorder %v114, 0.0
  %vm133 = vcmp.ge.f32.partialorder %v119, 0.0
  %vm134 = vcmp.ge.f32.partialorder %v124, 0.0
  %vm135 = vcmp.ge.f32.partialorder %v129, 0.0
  %v136 = vmul.f32 %v114, 0.1
  %v137 = vmul.f32 %v119, 0.1
  %v138 = vmul.f32 %v124, 0.1
  %v139 = vmul.f32 %v129, 0.1
  %v140 = vsel %vm132, %v114, %v136
  %v141 = vsel %vm133, %v119, %v137
  %v142 = vsel %vm134, %v124, %v138
  %v143 = vsel %vm135, %v129, %v139
  %vm144 = vcmask 130048
  %145 = vst.msk [vmem:[%s3] sm:$0xff] %vm144, %v140
  %146 = vst.msk [vmem:[%s3 + $0x8] sm:$0xff] %vm144, %v141
  %147 = vst.msk [vmem:[%s3 + $0x10] sm:$0xff] %vm144, %v142
  %148 = vst.msk [vmem:[%s3 + $0x18] sm:$0xff] %vm144, %v143
  // Predicated region
  $region14: #{feature_pyramid_forward.6} parent=0 // pred_check
    _
  $region15: #{feature_pyramid_forward.6} parent=0 // pred_check_branch
    %150 = sbr.rel (0) target = $region17
  $region16: #{feature_pyramid_forward.6} parent=0 // pred_region
    _
  $region17: #{feature_pyramid_forward.6} parent=0 // pred_fallthru
    _
  // Predicated region
  $region18: #{feature_pyramid_forward.6} parent=0 // pred_check
    _
  $region19: #{feature_pyramid_forward.6} parent=0 // pred_check_branch
    %152 = sbr.rel (0) target = $region21
  $region20: #{feature_pyramid_forward.6} parent=0 // pred_region
    _
  $region21: #{feature_pyramid_forward.6} parent=0 // pred_fallthru
    _

// kernel: feature_pyramid_forward.7
$region0: #{feature_pyramid_forward.7}
  #allocation0 [shape = 'u32[]', space=smem, size = 0x4, offset = 0x4, fixed_abs, tag = 'smem constant byte address 0x4 - core index']
  #allocation1 [shape = 'u32[144,128]{1,0:T(1,128)}', space=vmem, size = 0x12000, scoped, tag = 'internal scratch']
  %s0 = inlined_call_operand.vmem [shape: f32[32,144], index: 0, kind: input, shape index: {}]
  %s1 = inlined_call_operand.vmem [shape: f32[32,8], index: 1, kind: input, shape index: {}]
  %s2 = inlined_call_operand.vmem [shape: f32[144,16], index: 2, kind: input, shape index: {}]
  %s3 = inlined_call_operand.vmem [shape: f32[8,16], index: 3, kind: input, shape index: {}]
  %s4 = inlined_call_operand.vmem [shape: f32[1,16], index: 4, kind: input, shape index: {}]
  %s5 = inlined_call_operand.hbm [shape: f32[32,16], index: 5, kind: output, shape index: {}]
  %s6 = sld [smem:[#allocation0]]
  $region30: #{feature_pyramid_forward.7} parent=0
    _
  %s8 = ssub.s32 1, %s6
  %s9 = scalar_select 0, %s8, %s6
  $region1: #{feature_pyramid_forward.7} parent=0
    #allocation2 [shape = 'u8[16384]{0}', space=vmem, size = 0x4000, scoped, tag = 'output window, operand 0, single buffered']
    #allocation3 [shape = 's32[1]{0}', space=sflag, size = 0x4, scoped, tag = 'scoped memory for feature_pyramid_forward.7']
    %10 = vsyncpa [#allocation3], 0
    // Predicated region
    $region2: #{feature_pyramid_forward.7} parent=1 // pred_check
      _
    $region3: #{feature_pyramid_forward.7} parent=1 // pred_check_branch
      %12 = sbr.rel (0) target = $region5
    $region4: #{feature_pyramid_forward.7} parent=1 // pred_region
      _
    $region5: #{feature_pyramid_forward.7} parent=1 // pred_fallthru
      _
    // Predicated region
    $region6: #{feature_pyramid_forward.7} parent=1 // pred_check
      _
    $region7: #{feature_pyramid_forward.7} parent=1 // pred_check_branch
      %14 = sbr.rel (0) target = $region9
    $region8: #{feature_pyramid_forward.7} parent=1 // pred_region
      _
    $region9: #{feature_pyramid_forward.7} parent=1 // pred_fallthru
      _
    // Predicated region
    $region10: #{feature_pyramid_forward.7} parent=1 // pred_check
      _
    $region11: #{feature_pyramid_forward.7} parent=1 // pred_check_branch
      %16 = sbr.rel (0) target = $region13
    $region12: #{feature_pyramid_forward.7} parent=1 // pred_region
      _
    $region13: #{feature_pyramid_forward.7} parent=1 // pred_fallthru
      _
    // Predicated region
    $region14: #{feature_pyramid_forward.7} parent=1 // pred_check
      _
    $region15: #{feature_pyramid_forward.7} parent=1 // pred_check_branch
      %18 = sbr.rel (0) target = $region17
    $region16: #{feature_pyramid_forward.7} parent=1 // pred_region
      _
    $region17: #{feature_pyramid_forward.7} parent=1 // pred_fallthru
      _
    // Predicated region
    $region18: #{feature_pyramid_forward.7} parent=1 // pred_check
      _
    $region19: #{feature_pyramid_forward.7} parent=1 // pred_check_branch
      %20 = sbr.rel (0) target = $region21
    $region20: #{feature_pyramid_forward.7} parent=1 // pred_region
      _
    $region21: #{feature_pyramid_forward.7} parent=1 // pred_fallthru
      _
    %v21 = vld [vmem:[%s0] sm:$0xff]
    %v22 = vld [vmem:[%s0 + $0x8] sm:$0xff]
    %v23 = vld [vmem:[%s0 + $0x10] sm:$0xff]
    %v24 = vld [vmem:[%s0 + $0x18] sm:$0xff]
    %v25 = vld [vmem:[%s0 + $0x20] sm:$0xff]
    %v26 = vld [vmem:[%s0 + $0x28] sm:$0xff]
    %v27 = vld [vmem:[%s0 + $0x30] sm:$0xff]
    %v28 = vld [vmem:[%s0 + $0x38] sm:$0xff]
    %v29 = vld [vmem:[%s2] sm:$0xff]
    %v30 = vld [vmem:[%s2 + $0x8] sm:$0xff]
    %v31 = vld [vmem:[%s2 + $0x10] sm:$0xff]
    %v32 = vld [vmem:[%s2 + $0x18] sm:$0xff]
    %v33 = vld [vmem:[%s2 + $0x20] sm:$0xff]
    %v34 = vld [vmem:[%s2 + $0x28] sm:$0xff]
    %v35 = vld [vmem:[%s2 + $0x30] sm:$0xff]
    %v36 = vld [vmem:[%s2 + $0x38] sm:$0xff]
    %v37 = vld [vmem:[%s2 + $0x40] sm:$0xff]
    %v38 = vld [vmem:[%s2 + $0x48] sm:$0xff]
    %v39 = vld [vmem:[%s2 + $0x50] sm:$0xff]
    %v40 = vld [vmem:[%s2 + $0x58] sm:$0xff]
    %v41 = vld [vmem:[%s2 + $0x60] sm:$0xff]
    %v42 = vld [vmem:[%s2 + $0x68] sm:$0xff]
    %v43 = vld [vmem:[%s2 + $0x70] sm:$0xff]
    %v44 = vld [vmem:[%s2 + $0x78] sm:$0xff]
    %v45 = vld [vmem:[%s2 + $0x80] sm:$0xff]
    %v46 = vld [vmem:[%s2 + $0x88] sm:$0xff]
    %v47 = vld [vmem:[%s1] sm:$0xff]
    %v48 = vld [vmem:[%s1 + $0x8] sm:$0xff]
    %v49 = vld [vmem:[%s1 + $0x10] sm:$0xff]
    %v50 = vld [vmem:[%s1 + $0x18] sm:$0xff]
    %v51 = vld [vmem:[%s3] sm:$0xff]
    %vm52 = vcmask 64512
    %v54 = vsel %vm52, %v47, 0
    %v57 = vsel %vm52, %v48, 0
    %v60 = vsel %vm52, %v49, 0
    %v63 = vsel %vm52, %v50, 0
    %65 = vmatprep.subr.mxu0 0.0
    %66 = vmatpush1.msra.mxu0 %v51
    %67 = vmatprep.subr.mxu0 0.0
    %68 = vmatpush1.msra.mxu0 0.0
    %69 = vmatprep.subr.mxu0 0.0
    %70 = vmatpush1.msra.mxu0 0.0
    %71 = vmatprep.subr.mxu0 0.0
    %72 = vmatpush1.msra.mxu0 0.0
    %73 = vmatprep.subr.mxu0 0.0
    %74 = vmatpush1.msra.mxu0 0.0
    %75 = vmatprep.subr.mxu0 0.0
    %76 = vmatpush1.msra.mxu0 0.0
    %77 = vmatprep.subr.mxu0 0.0
    %78 = vmatpush1.msra.mxu0 0.0
    %79 = vmatprep.subr.mxu0 0.0
    %80 = vmatpush1.msra.mxu0 0.0
    %81 = vmatprep.subr.mxu0 0.0
    %82 = vmatpush1.msra.mxu0 0.0
    %83 = vmatprep.subr.mxu0 0.0
    %84 = vmatpush1.msra.mxu0 0.0
    %85 = vmatprep.subr.mxu0 0.0
    %86 = vmatpush1.msra.mxu0 0.0
    %87 = vmatprep.subr.mxu0 0.0
    %88 = vmatpush1.msra.mxu0 0.0
    %89 = vmatprep.subr.mxu0 0.0
    %90 = vmatpush1.msra.mxu0 0.0
    %91 = vmatprep.subr.mxu0 0.0
    %92 = vmatpush1.msra.mxu0 0.0
    %93 = vmatprep.subr.mxu0 0.0
    %94 = vmatpush1.msra.mxu0 0.0
    %95 = vmatprep.subr.mxu0 0.0
    %96 = vmatpush1.msra.mxu0 0.0
    %97 = vmatprep.subr.mxu0 0.0
    %98 = vmatpush1.msra.mxu0 0.0
    %99 = vmatprep.subr.mxu0 0.0
    %100 = vmatpush1.msra.mxu0 0.0
    %101 = vmatprep.subr.mxu0 0.0
    %102 = vmatpush1.msra.mxu0 0.0
    %103 = vmatprep.subr.mxu0 0.0
    %104 = vmatpush1.msra.mxu0 0.0
    %105 = vmatprep.subr.mxu0 0.0
    %106 = vmatpush1.msra.mxu0 0.0
    %107 = vmatprep.subr.mxu0 0.0
    %108 = vmatpush1.msra.mxu0 0.0
    %109 = vmatprep.subr.mxu0 0.0
    %110 = vmatpush1.msra.mxu0 0.0
    %111 = vmatprep.subr.mxu0 0.0
    %112 = vmatpush1.msra.mxu0 0.0
    %113 = vmatprep.subr.mxu0 0.0
    %114 = vmatpush1.msra.mxu0 0.0
    %115 = vmatprep.subr.mxu0 0.0
    %116 = vmatpush1.msra.mxu0 0.0
    %117 = vmatprep.subr.mxu0 0.0
    %118 = vmatpush1.msra.mxu0 0.0
    %119 = vmatprep.subr.mxu0 0.0
    %120 = vmatpush1.msra.mxu0 0.0
    %121 = vmatprep.subr.mxu0 0.0
    %122 = vmatpush1.msra.mxu0 0.0
    %123 = vmatprep.subr.mxu0 0.0
    %124 = vmatpush1.msra.mxu0 0.0
    %125 = vmatprep.subr.mxu0 0.0
    %126 = vmatpush1.msra.mxu0 0.0
    %127 = vmatprep.subr.mxu0 0.0
    %128 = vmatpush1.msra.mxu0 0.0
    %129 = vmatprep.mubr.f32.mxu0 0.0
    %130 = vmatmul.mubr.f32.gmra.mrb[0].mxu0 %v54
    %v131 = vpop.f32.mrb[0].mxu0
    %v132 = vadd.f32 0.0, %v131
    %v133 = vpop.f32.mrb[0].mxu0
    %134 = vmatprep.mubr.f32.mxu0 0.0
    %135 = vmatmul.mubr.f32.gmra.mrb[0].mxu0 %v57
    %v136 = vpop.f32.mrb[0].mxu0
    %v137 = vadd.f32 0.0, %v136
    %v138 = vpop.f32.mrb[0].mxu0
    %139 = vmatprep.mubr.f32.mxu0 0.0
    %140 = vmatmul.mubr.f32.gmra.mrb[0].mxu0 %v60
    %v141 = vpop.f32.mrb[0].mxu0
    %v142 = vadd.f32 0.0, %v141
    %v143 = vpop.f32.mrb[0].mxu0
    %144 = vmatprep.mubr.f32.mxu0 0.0
    %145 = vmatmul.mubr.f32.gmra.mrb[0].mxu0 %v63
    %v146 = vpop.f32.mrb[0].mxu0
    %v147 = vadd.f32 0.0, %v146
    %v148 = vpop.f32.mrb[0].mxu0
    %149 = vdwg.mxu0
    %vm150 = vcmask 130048
    %v152 = vsel %vm150, %v22, 0
    %v155 = vsel %vm150, %v24, 0
    %v158 = vsel %vm150, %v26, 0
    %v161 = vsel %vm150, %v28, 0
    %163 = vmatprep.subr.mxu0 0.0
    %164 = vmatpush1.msra.mxu0 %v29
    %165 = vmatprep.subr.mxu0 0.0
    %166 = vmatpush1.msra.mxu0 %v30
    %167 = vmatprep.subr.mxu0 0.0
    %168 = vmatpush1.msra.mxu0 %v31
    %169 = vmatprep.subr.mxu0 0.0
    %170 = vmatpush1.msra.mxu0 %v32
    %171 = vmatprep.subr.mxu0 0.0
    %172 = vmatpush1.msra.mxu0 %v33
    %173 = vmatprep.subr.mxu0 0.0
    %174 = vmatpush1.msra.mxu0 %v34
    %175 = vmatprep.subr.mxu0 0.0
    %176 = vmatpush1.msra.mxu0 %v35
    %177 = vmatprep.subr.mxu0 0.0
    %178 = vmatpush1.msra.mxu0 %v36
    %179 = vmatprep.subr.mxu0 0.0
    %180 = vmatpush1.msra.mxu0 %v37
    %181 = vmatprep.subr.mxu0 0.0
    %182 = vmatpush1.msra.mxu0 %v38
    %183 = vmatprep.subr.mxu0 0.0
    %184 = vmatpush1.msra.mxu0 %v39
    %185 = vmatprep.subr.mxu0 0.0
    %186 = vmatpush1.msra.mxu0 %v40
    %187 = vmatprep.subr.mxu0 0.0
    %188 = vmatpush1.msra.mxu0 %v41
    %189 = vmatprep.subr.mxu0 0.0
    %190 = vmatpush1.msra.mxu0 %v42
    %191 = vmatprep.subr.mxu0 0.0
    %192 = vmatpush1.msra.mxu0 %v43
    %193 = vmatprep.subr.mxu0 0.0
    %194 = vmatpush1.msra.mxu0 %v44
    %195 = vmatprep.subr.mxu0 0.0
    %196 = vmatpush1.msra.mxu0 %v45
    %197 = vmatprep.subr.mxu0 0.0
    %198 = vmatpush1.msra.mxu0 %v46
    %199 = vmatprep.subr.mxu0 0.0
    %200 = vmatpush1.msra.mxu0 0.0
    %201 = vmatprep.subr.mxu0 0.0
    %202 = vmatpush1.msra.mxu0 0.0
    %203 = vmatprep.subr.mxu0 0.0
    %204 = vmatpush1.msra.mxu0 0.0
    %205 = vmatprep.subr.mxu0 0.0
    %206 = vmatpush1.msra.mxu0 0.0
    %207 = vmatprep.subr.mxu0 0.0
    %208 = vmatpush1.msra.mxu0 0.0
    %209 = vmatprep.subr.mxu0 0.0
    %210 = vmatpush1.msra.mxu0 0.0
    %211 = vmatprep.subr.mxu0 0.0
    %212 = vmatpush1.msra.mxu0 0.0
    %213 = vmatprep.subr.mxu0 0.0
    %214 = vmatpush1.msra.mxu0 0.0
    %215 = vmatprep.subr.mxu0 0.0
    %216 = vmatpush1.msra.mxu0 0.0
    %217 = vmatprep.subr.mxu0 0.0
    %218 = vmatpush1.msra.mxu0 0.0
    %219 = vmatprep.subr.mxu0 0.0
    %220 = vmatpush1.msra.mxu0 0.0
    %221 = vmatprep.subr.mxu0 0.0
    %222 = vmatpush1.msra.mxu0 0.0
    %223 = vmatprep.subr.mxu0 0.0
    %224 = vmatpush1.msra.mxu0 0.0
    %225 = vmatprep.subr.mxu0 0.0
    %226 = vmatpush1.msra.mxu0 0.0
    %227 = vmatprep.mubr.f32.mxu0 %v152
    %228 = vmatmul.mubr.f32.gmra.mrb[0].mxu0 %v21
    %v229 = vpop.f32.mrb[0].mxu0
    %v230 = vadd.f32 %v132, %v229
    %v231 = vpop.f32.mrb[0].mxu0
    %232 = vmatprep.mubr.f32.mxu0 %v155
    %233 = vmatmul.mubr.f32.gmra.mrb[0].mxu0 %v23
    %v234 = vpop.f32.mrb[0].mxu0
    %v235 = vadd.f32 %v137, %v234
    %v236 = vpop.f32.mrb[0].mxu0
    %237 = vmatprep.mubr.f32.mxu0 %v158
    %238 = vmatmul.mubr.f32.gmra.mrb[0].mxu0 %v25
    %v239 = vpop.f32.mrb[0].mxu0
    %v240 = vadd.f32 %v142, %v239
    %v241 = vpop.f32.mrb[0].mxu0
    %242 = vmatprep.mubr.f32.mxu0 %v161
    %243 = vmatmul.mubr.f32.gmra.mrb[0].mxu0 %v27
    %v244 = vpop.f32.mrb[0].mxu0
    %v245 = vadd.f32 %v147, %v244
    %v246 = vpop.f32.mrb[0].mxu0
    %247 = vdwg.mxu0
    %v248 = vld [vmem:[%s4] sm:$0x1]
    %v250 = vlaneseq
    %v251 = vshrl.u32 %v250, 7
    %v252 = vsub.s32 0, %v251
    %v253 = vrot.slane %v248, %v252
    %v255 = vadd.f32 %v230, %v253
    %v256 = vadd.f32 %v235, %v253
    %v257 = vadd.f32 %v240, %v253
    %v258 = vadd.f32 %v245, %v253
    %vm259 = vcmp.ge.f32.partialorder %v255, 0.0
    %vm260 = vcmp.ge.f32.partialorder %v256, 0.0
    %vm261 = vcmp.ge.f32.partialorder %v257, 0.0
    %vm262 = vcmp.ge.f32.partialorder %v258, 0.0
    %v263 = vmul.f32 %v255, 0.1
    %v264 = vmul.f32 %v256, 0.1
    %v265 = vmul.f32 %v257, 0.1
    %v266 = vmul.f32 %v258, 0.1
    %v267 = vsel %vm259, %v255, %v263
    %v268 = vsel %vm260, %v256, %v264
    %v269 = vsel %vm261, %v257, %v265
    %v270 = vsel %vm262, %v258, %v266
    %271 = vst.msk [vmem:[#allocation2] sm:$0xff] %vm150, %v267
    %272 = vst.msk [vmem:[#allocation2 + $0x8] sm:$0xff] %vm150, %v268
    %273 = vst.msk [vmem:[#allocation2 + $0x10] sm:$0xff] %vm150, %v269
    %274 = vst.msk [vmem:[#allocation2 + $0x18] sm:$0xff] %vm150, %v270
    // Predicated region
    $region22: #{feature_pyramid_forward.7} parent=1 // pred_check
      _
    $region23: #{feature_pyramid_forward.7} parent=1 // pred_check_branch
      %276 = sbr.rel (0) target = $region25
    $region24: #{feature_pyramid_forward.7} parent=1 // pred_region
      %s278 = ssub.s32 512, 512
      %279 = vsyncadd [#allocation3], %s278
      %s280 = sshll.u32 [#allocation2], 4
      %s281 = int_to_ptr.vmem [resolvable:$true] %s280
      %286 = dma.vmem_to_hbm [thread:$0]  %s281, 512, %s5, [#allocation3], 128, 128, 8
    $region25: #{feature_pyramid_forward.7} parent=1 // pred_fallthru
      _
    // Predicated region
    $region26: #{feature_pyramid_forward.7} parent=1 // pred_check
      _
    $region27: #{feature_pyramid_forward.7} parent=1 // pred_check_branch
      %288 = sbr.rel (0) target = $region29
    $region28: #{feature_pyramid_forward.7} parent=1 // pred_region
      %289 = dma.done [#allocation3], 512
    $region29: #{feature_pyramid_forward.7} parent=1 // pred_fallthru
      _
    %290 = vsyncpa [#allocation3], 1

</llo_original>
